<compile_context>
chip_gen: v7x
topology: tpu7x:2x2x1
jax: 0.10.0
libtpu: 0.0.40
codegen_flags: <defaults>
</compile_context>

<pallas_src>
import numpy as np

import jax
import jax.numpy as jnp
from jax import lax
from jax.experimental import pallas as pl
from jax.experimental.pallas import tpu as pltpu


_SLOT_TILE = 128    # lane width of one output-slot tile
_CLS_CHUNK = 128    # class-lane chunk reduced per accumulation step
_MAX_UNROLL = 8     # python-unroll loops with at most this many steps


def _multihot_kernel(x_ref, idx_ref, cnt_ref, tri_ref, csum_ref):
    """Compact active class indices for one (TB, C) batch block.

    x_ref    (TB, C) any    : multihot block (nonzero == active; NaN counts as active).
    idx_ref  (TB, K) int32  : row b gets its active class indices (ascending) in
                              slots [0, count_b); remaining slots are -1.
    cnt_ref  (TB, 1) int32  : number of active classes per row.
    tri_ref  (C, C)  bf16   : VMEM scratch; tri[c, j] = (c <= j), built once.
    csum_ref (TB, C) f32    : VMEM scratch; inclusive cumsum of the active mask.
    """
    tb, c = x_ref.shape
    k_pad = idx_ref.shape[1]

    # Build the triangular matrix once; the (single) grid axis is "arbitrary"
    # (sequential), so every later grid step sees the initialized scratch.
    # TODO(synk): for very large C replace the (C, C) matmul cumsum with a
    # log-step pltpu.roll cumsum so no C^2 scratch is needed at all.
    @pl.when(pl.program_id(0) == 0)
    def _():
        row = lax.broadcasted_iota(jnp.int32, (c, c), 0)
        col = lax.broadcasted_iota(jnp.int32, (c, c), 1)
        tri_ref[...] = (row <= col).astype(jnp.bfloat16)

    # Active mask; 0/1 is exact in bf16 and the MXU accumulates in f32, so the
    # cumulative sum below is exact.
    mask = (x_ref[...] != 0).astype(jnp.bfloat16)                            # (TB, C)

    # Inclusive cumsum along classes via one MXU matmul, kept in f32.
    csum = jnp.dot(mask, tri_ref[...], preferred_element_type=jnp.float32)   # (TB, C)
    csum_ref[...] = csum

    cnt_i = jnp.max(csum, axis=-1, keepdims=True).astype(jnp.int32)          # (TB, 1)
    cnt_ref[...] = cnt_i
    mc = jnp.max(cnt_i)                                                      # block max count

    # Hoisted iotas (JAX does not CSE broadcast_in_dim).
    slot3 = lax.broadcasted_iota(jnp.int32, (1, _SLOT_TILE, _CLS_CHUNK), 1)  # slot id, 3-D
    slot2 = lax.broadcasted_iota(jnp.int32, (1, _SLOT_TILE), 1)              # slot id, 2-D

    num_tiles = k_pad // _SLOT_TILE
    num_chunks = c // _CLS_CHUNK

    # Pre-fill the whole output block with -1; only tiles below the block max
    # count are recomputed below (typical multilabel data: one active tile).
    idx_ref[...] = jnp.full((tb, k_pad), -1, dtype=jnp.int32)

    def emit_slot_tile(j0):
        # Skip slot tiles entirely past this block's max count.
        @pl.when(j0 < mc)
        def _():
            thr = (slot3 + j0).astype(jnp.float32)                           # (1, TJ, CC)

            def chunk_sum(c0, acc):
                ch = csum_ref[:, pl.ds(c0, _CLS_CHUNK)]                      # (TB, CC) f32
                le = ch[:, None, :] <= thr                                   # (TB, TJ, CC)
                return acc + jnp.sum(le.astype(jnp.float32), axis=-1)        # (TB, TJ)

            acc0 = jnp.zeros((tb, _SLOT_TILE), jnp.float32)
            if num_chunks <= _MAX_UNROLL:
                acc = acc0
                for ci in range(num_chunks):
                    acc = chunk_sum(ci * _CLS_CHUNK, acc)
            else:
                acc = lax.fori_loop(
                    0, num_chunks,
                    lambda ci, a: chunk_sum(
                        pl.multiple_of(ci * _CLS_CHUNK, _CLS_CHUNK), a),
                    acc0, unroll=2)

            valid = (slot2 + j0) < cnt_i                                     # (TB, TJ)
            vals = acc.astype(jnp.int32)
            idx_ref[:, pl.ds(j0, _SLOT_TILE)] = jnp.where(valid, vals, -1)

    if num_tiles <= _MAX_UNROLL:
        for t in range(num_tiles):
            emit_slot_tile(t * _SLOT_TILE)
    else:
        def tile_body(t, carry):
            emit_slot_tile(pl.multiple_of(t * _SLOT_TILE, _SLOT_TILE))
            return carry

        lax.fori_loop(0, num_tiles, tile_body, 0)


def _round_up(n: int, m: int) -> int:
    return ((n + m - 1) // m) * m


def multihot_to_indices_pallas(multihot: jax.Array, *, max_labels=None,
                               max_block_rows: int = 64):
    """Returns (idx, counts).

    idx    (B, K_pad) int32 : per-row active class indices (ascending), -1 padded.
    counts (B,)       int32 : number of active classes per row.
    """
    B, C = multihot.shape
    x = multihot
    if x.dtype == jnp.bool_:
        x = x.astype(jnp.int8)                 # smallest HBM footprint, no upcast
    elif np.dtype(x.dtype).itemsize > 4:
        x = x.astype(jnp.float32)              # 64-bit inputs do not lower on TPU

    itemsize = np.dtype(x.dtype).itemsize
    # Lane-align classes, sublane-align the batch block for the input dtype.
    c_pad = _round_up(max(C, _SLOT_TILE), _SLOT_TILE)
    sub = max(8, 32 // itemsize)               # 8 (4B) / 16 (2B) / 32 (1B)
    tb = min(_round_up(max_block_rows, sub), _round_up(B, sub))
    b_pad = _round_up(B, tb)
    if (b_pad, c_pad) != (B, C):
        x = jnp.pad(x, ((0, b_pad - B), (0, c_pad - C)))   # zero pad == inactive

    # Static cap on the emitted slot width; default = all classes (exact torch
    # semantics).  Rows with more than max_labels actives would be truncated.
    k = C if max_labels is None else max(1, min(int(max_labels), C))
    k_pad = min(_round_up(k, _SLOT_TILE), c_pad)

    # Size the scoped-VMEM budget to the actual block footprint (v5e's default
    # scoped limit is only 16 MiB).
    est = (2 * tb * c_pad * itemsize                 # input blocks (double-buffered)
           + 2 * tb * k_pad * 4                      # idx blocks
           + 2 * tb * _SLOT_TILE * 4                 # cnt blocks (lane-padded)
           + c_pad * c_pad * 2                       # tri scratch (bf16, single)
           + tb * c_pad * 4                          # csum scratch
           + 4 * tb * _SLOT_TILE * _CLS_CHUNK * 4)   # compare/reduce intermediates
    vmem_limit = int(min(64 * 2**20, max(32 * 2**20, 1.5 * est)))

    idx, cnt = pl.pallas_call(
        _multihot_kernel,
        out_shape=(jax.ShapeDtypeStruct((b_pad, k_pad), jnp.int32),
                   jax.ShapeDtypeStruct((b_pad, 1), jnp.int32)),
        grid=(b_pad // tb,),
        in_specs=[pl.BlockSpec((tb, c_pad), lambda i: (i, 0))],
        out_specs=(pl.BlockSpec((tb, k_pad), lambda i: (i, 0)),
                   pl.BlockSpec((tb, 1), lambda i: (i, 0))),
        scratch_shapes=[pltpu.VMEM((c_pad, c_pad), jnp.bfloat16),   # tri (single-buffered)
                        pltpu.VMEM((tb, c_pad), jnp.float32)],      # csum
        # "arbitrary": the grid runs sequentially so the one-time tri init at
        # program_id == 0 is visible to every later step.
        # TODO(synk): for v7x dual-TC, switch the batch axis to CORE_PARALLEL
        # with a per-core tri init (or a roll-based cumsum) and >= 2 grid steps.
        compiler_params=pltpu.CompilerParams(
            dimension_semantics=("arbitrary",),
            vmem_limit_bytes=vmem_limit),
    )(x)
    return idx[:B], cnt[:B, 0]


class MultihotToMultinames:
    """JAX/Pallas port of torchwrench.nn.modules.multilabel.MultihotToMultinames."""

    def __init__(self, idx_to_name):
        self.idx_to_name = dict(idx_to_name)

    def __call__(self, multihot: jax.Array, *, max_labels=None):
        idx, counts = multihot_to_indices_pallas(multihot, max_labels=max_labels)
        # Single combined D2H transfer; counts come straight from the kernel.
        idx_h, counts_h = jax.device_get((idx, counts))
        idx_h = np.asarray(idx_h)
        counts_h = np.asarray(counts_h)
        # TODO(synk): mapping int -> arbitrary Python name objects is a host-side
        # dict lookup with no Pallas/tensor equivalent; done here in Python.
        names = []
        for b in range(idx_h.shape[0]):
            kb = int(counts_h[b])
            names.append([self.idx_to_name[int(i)] for i in idx_h[b, :kb]])
        return names


if __name__ == "__main__":
    B, C = 8, 16  # batch, num_classes (small)
    key = jax.random.PRNGKey(0)
    multihot = (jax.random.uniform(key, (B, C)) < 0.3).astype(jnp.float32)

    idx_to_name = {i: f"class_{i}" for i in range(C)}
    module = MultihotToMultinames(idx_to_name)

    # Run the kernel once and block on the result.
    idx, counts = multihot_to_indices_pallas(multihot)
    jax.block_until_ready((idx, counts))

    names = module(multihot)

    # Host-side reference check.
    mh = np.asarray(jax.device_get(multihot))
    idx_h = np.asarray(jax.device_get(idx))
    counts_h = np.asarray(jax.device_get(counts))
    ref_names = [[idx_to_name[int(i)] for i in np.nonzero(mh[b])[0]] for b in range(B)]
    for b in range(B):
        nz = np.nonzero(mh[b])[0]
        assert int(counts_h[b]) == len(nz), (b, counts_h[b], nz)
        assert list(idx_h[b, : len(nz)]) == list(nz), (b, idx_h[b], nz)
        assert np.all(idx_h[b, len(nz):] == -1), (b, idx_h[b])
    assert names == ref_names, (names, ref_names)

    print("KERNEL_OK")
</pallas_src>

<mosaic_0001>
module attributes {stable_mosaic.version = 11 : i64} {
  func.func @_multihot_kernel(%arg0: i32, %arg1: memref<8x128xf32, #tpu.memory_space<vmem>>, %arg2: memref<8x128xi32, #tpu.memory_space<vmem>>, %arg3: memref<8x1xi32, #tpu.memory_space<vmem>>, %arg4: memref<128x128xbf16, #tpu.memory_space<vmem>>, %arg5: memref<8x128xf32, #tpu.memory_space<vmem>>) attributes {dimension_semantics = [#tpu.dimension_semantics<arbitrary>], iteration_bounds = array<i64: 1>, scalar_prefetch = 0 : i64, scratch_operands = 2 : i64, tpu.core_type = #tpu.core_type<tc>, window_params = [{transform_indices = @transform_0, window_bounds = array<i64: 8, 128>}, {transform_indices = @transform_1, window_bounds = array<i64: 8, 128>}, {transform_indices = @transform_2, window_bounds = array<i64: 8, 1>}]} {
    %c0_i32 = arith.constant 0 : i32
    %0 = arith.cmpi eq, %arg0, %c0_i32 : i32
    %1 = arith.extui %0 : i1 to i32
    %c0_i32_0 = arith.constant 0 : i32
    %2 = arith.cmpi ne, %1, %c0_i32_0 : i32
    scf.if %2 {
      %27 = tpu.iota {dimensions = array<i32: 0>} : vector<128x128xi32>
      %28 = tpu.iota {dimensions = array<i32: 1>} : vector<128x128xi32>
      %29 = arith.cmpi sle, %27, %28 : vector<128x128xi32>
      %30 = arith.extui %29 : vector<128x128xi1> to vector<128x128xi32>
      %31 = arith.sitofp %30 : vector<128x128xi32> to vector<128x128xf32>
      %32 = arith.truncf %31 : vector<128x128xf32> to vector<128x128xbf16>
      %c0_15 = arith.constant 0 : index
      %c0_16 = arith.constant 0 : index
      %33 = vector.load %arg4[%c0_15, %c0_16] : memref<128x128xbf16, #tpu.memory_space<vmem>>, vector<128x128xbf16>
      tpu.vector_store %arg4[%c0_15, %c0_16], %32 {strides = array<i32>} : memref<128x128xbf16, #tpu.memory_space<vmem>>, vector<128x128xbf16>,
    } else {
    }
    %c0 = arith.constant 0 : index
    %c0_1 = arith.constant 0 : index
    %3 = vector.load %arg1[%c0, %c0_1] : memref<8x128xf32, #tpu.memory_space<vmem>>, vector<8x128xf32>
    %cst = arith.constant 0.000000e+00 : f32
    %4 = vector.broadcast %cst : f32 to vector<8x128xf32>
    %5 = arith.cmpf one, %3, %4 : vector<8x128xf32>
    %6 = arith.extui %5 : vector<8x128xi1> to vector<8x128xi32>
    %7 = arith.sitofp %6 : vector<8x128xi32> to vector<8x128xf32>
    %8 = arith.truncf %7 : vector<8x128xf32> to vector<8x128xbf16>
    %c0_2 = arith.constant 0 : index
    %c0_3 = arith.constant 0 : index
    %9 = vector.load %arg4[%c0_2, %c0_3] : memref<128x128xbf16, #tpu.memory_space<vmem>>, vector<128x128xbf16>
    %cst_4 = arith.constant dense<0.000000e+00> : vector<8x128xf32>
    %10 = tpu.matmul %8, %9, %cst_4 {dimension_numbers = #tpu.dot_dimension_numbers<[1], [0], [0], [1], [0, 0, 1, 1], [], []>} : vector<8x128xbf16>, vector<128x128xbf16>, vector<8x128xf32> -> vector<8x128xf32>
    %c0_5 = arith.constant 0 : index
    %c0_6 = arith.constant 0 : index
    %11 = vector.load %arg5[%c0_5, %c0_6] : memref<8x128xf32, #tpu.memory_space<vmem>>, vector<8x128xf32>
    tpu.vector_store %arg5[%c0_5, %c0_6], %10 {strides = array<i32>} : memref<8x128xf32, #tpu.memory_space<vmem>>, vector<8x128xf32>,
    %cst_7 = arith.constant dense<0xFF800000> : vector<8xf32>
    %12 = vector.multi_reduction <maximumf>, %10, %cst_7 [1] : vector<8x128xf32> to vector<8xf32>
    %13 = vector.shape_cast %12 : vector<8xf32> to vector<8x1xf32>
    %14 = arith.fptosi %13 : vector<8x1xf32> to vector<8x1xi32>
    %c0_8 = arith.constant 0 : index
    %c0_9 = arith.constant 0 : index
    %15 = vector.load %arg3[%c0_8, %c0_9] : memref<8x1xi32, #tpu.memory_space<vmem>>, vector<8x1xi32>
    tpu.vector_store %arg3[%c0_8, %c0_9], %14 {strides = array<i32>} : memref<8x1xi32, #tpu.memory_space<vmem>>, vector<8x1xi32>,
    %16 = vector.shape_cast %14 : vector<8x1xi32> to vector<1x8x1xi32>
    %cst_10 = arith.constant dense<-2147483648> : vector<1xi32>
    %17 = vector.multi_reduction <maxsi>, %16, %cst_10 [1, 2] : vector<1x8x1xi32> to vector<1xi32>
    %18 = vector.shape_cast %17 : vector<1xi32> to vector<1x1x1xi32>
    %19 = vector.extract %18[0, 0, 0] : i32 from vector<1x1x1xi32>
    %20 = tpu.iota {dimensions = array<i32: 1>} : vector<1x128x128xi32>
    %21 = tpu.iota {dimensions = array<i32: 1>} : vector<1x128xi32>
    %c-1_i32 = arith.constant -1 : i32
    %22 = vector.broadcast %c-1_i32 : i32 to vector<8x128xi32>
    %c0_11 = arith.constant 0 : index
    %c0_12 = arith.constant 0 : index
    %23 = vector.load %arg2[%c0_11, %c0_12] : memref<8x128xi32, #tpu.memory_space<vmem>>, vector<8x128xi32>
    tpu.vector_store %arg2[%c0_11, %c0_12], %22 {strides = array<i32>} : memref<8x128xi32, #tpu.memory_space<vmem>>, vector<8x128xi32>,
    %c0_i32_13 = arith.constant 0 : i32
    %24 = arith.cmpi sgt, %19, %c0_i32_13 : i32
    %25 = arith.extui %24 : i1 to i32
    %c0_i32_14 = arith.constant 0 : i32
    %26 = arith.cmpi ne, %25, %c0_i32_14 : i32
    scf.if %26 {
      %c0_i32_15 = arith.constant 0 : i32
      %27 = vector.broadcast %c0_i32_15 : i32 to vector<1x128x128xi32>
      %28 = arith.addi %20, %27 : vector<1x128x128xi32>
      %29 = arith.sitofp %28 : vector<1x128x128xi32> to vector<1x128x128xf32>
      %cst_16 = arith.constant 0.000000e+00 : f32
      %30 = vector.broadcast %cst_16 : f32 to vector<8x128xf32>
      %c0_17 = arith.constant 0 : index
      %c0_18 = arith.constant 0 : index
      %31 = vector.load %arg5[%c0_17, %c0_18] : memref<8x128xf32, #tpu.memory_space<vmem>>, vector<8x128xf32>
      %32 = vector.shape_cast %31 : vector<8x128xf32> to vector<8x1x128xf32>
      %33 = vector.broadcast %32 : vector<8x1x128xf32> to vector<8x128x128xf32>
      %34 = vector.broadcast %29 : vector<1x128x128xf32> to vector<8x128x128xf32>
      %35 = arith.cmpf ole, %33, %34 : vector<8x128x128xf32>
      %36 = arith.extui %35 : vector<8x128x128xi1> to vector<8x128x128xi32>
      %37 = arith.sitofp %36 : vector<8x128x128xi32> to vector<8x128x128xf32>
      %cst_19 = arith.constant dense<0.000000e+00> : vector<8x128xf32>
      %38 = vector.multi_reduction <add>, %37, %cst_19 [2] : vector<8x128x128xf32> to vector<8x128xf32>
      %39 = arith.addf %30, %38 : vector<8x128xf32>
      %c0_i32_20 = arith.constant 0 : i32
      %40 = vector.broadcast %c0_i32_20 : i32 to vector<1x128xi32>
      %41 = arith.addi %21, %40 : vector<1x128xi32>
      %42 = vector.broadcast %41 : vector<1x128xi32> to vector<8x128xi32>
      %43 = vector.broadcast %14 : vector<8x1xi32> to vector<8x128xi32>
      %44 = arith.cmpi slt, %42, %43 : vector<8x128xi32>
      %45 = arith.fptosi %39 : vector<8x128xf32> to vector<8x128xi32>
      %c-1_i32_21 = arith.constant -1 : i32
      %46 = vector.broadcast %c-1_i32_21 : i32 to vector<8x128xi32>
      %47 = arith.select %44, %45, %46 : vector<8x128xi1>, vector<8x128xi32>
      %c0_22 = arith.constant 0 : index
      %c0_23 = arith.constant 0 : index
      %48 = vector.load %arg2[%c0_22, %c0_23] : memref<8x128xi32, #tpu.memory_space<vmem>>, vector<8x128xi32>
      tpu.vector_store %arg2[%c0_22, %c0_23], %47 {strides = array<i32>} : memref<8x128xi32, #tpu.memory_space<vmem>>, vector<8x128xi32>,
    } else {
    }
    return
  }
  func.func @transform_0(%arg0: i32) -> (i32, i32) {
    %c0_i32 = arith.constant 0 : i32
    %c0_i32_0 = arith.constant 0 : i32
    return %arg0, %c0_i32 : i32, i32
  }
  func.func @transform_1(%arg0: i32) -> (i32, i32) {
    %c0_i32 = arith.constant 0 : i32
    %c0_i32_0 = arith.constant 0 : i32
    return %arg0, %c0_i32 : i32, i32
  }
  func.func @transform_2(%arg0: i32) -> (i32, i32) {
    %c0_i32 = arith.constant 0 : i32
    %c0_i32_0 = arith.constant 0 : i32
    return %arg0, %c0_i32 : i32, i32
  }
}

</mosaic_0001>

<llo_original>
// kernel: tpu_custom_call.1
$region0: #{tpu_custom_call.1}
  #allocation0 [shape = 'u32[]', space=smem, size = 0x4, offset = 0x4, fixed_abs, tag = 'smem constant byte address 0x4 - core index']
  #allocation1 [shape = 'u32[144,128]{1,0:T(1,128)}', space=vmem, size = 0x12000, scoped, tag = 'internal scratch']
  #allocation2 [shape = 'bf16[128,128]{1,0:T(16,128)(2,1)}', space=vmem, size = 0x8000, scoped, tag = 'scratch operand']
  #allocation3 [shape = 'f32[8,128]{1,0:T(8,128)}', space=vmem, size = 0x1000, scoped, tag = 'scratch operand']
  %s0 = inlined_call_operand.hbm [shape: f32[8,128], index: 0, kind: input, shape index: {}]
  %s1 = inlined_call_operand.hbm [shape: s32[8,128], index: 1, kind: output, shape index: {0}]
  %s2 = inlined_call_operand.vmem [shape: s32[8,1], index: 2, kind: output, shape index: {1}]
  %3 = xla_tuple %s1, %s2
  %s4 = sld [smem:[#allocation0]]
  $region34: #{tpu_custom_call.1} parent=0
    _
  %s6 = ssub.s32 1, %s4
  %s7 = scalar_select 0, %s6, %s4
  $region1: #{tpu_custom_call.1} parent=0
    #allocation4 [shape = 'u8[4096]{0}', space=vmem, size = 0x1000, scoped, tag = 'input window, operand 0, single buffered']
    #allocation5 [shape = 's32[1]{0}', space=sflag, size = 0x4, scoped, tag = 'scoped memory for tpu_custom_call.1']
    #allocation6 [shape = 's32[1]{0}', space=sflag, size = 0x4, scoped, tag = 'scoped memory for tpu_custom_call.1']
    #allocation7 [shape = 'u8[4096]{0}', space=vmem, size = 0x1000, scoped, tag = 'output window, operand 0, single buffered']
    %8 = vsyncpa [#allocation5], 0
    %9 = vsyncpa [#allocation6], 0
    // Predicated region
    $region2: #{tpu_custom_call.1} parent=1 // pred_check
      _
    $region3: #{tpu_custom_call.1} parent=1 // pred_check_branch
      %11 = sbr.rel (0) target = $region5
    $region4: #{tpu_custom_call.1} parent=1 // pred_region
      %s13 = ssub.s32 128, 128
      %14 = vsyncadd [#allocation5], %s13
      %s16 = sshll.u32 [#allocation4], 4
      %s17 = int_to_ptr.vmem [resolvable:$true] %s16
      %19 = dma.hbm_to_vmem [thread:$0]  %s0, 128, %s17, [#allocation5]
    $region5: #{tpu_custom_call.1} parent=1 // pred_fallthru
      _
    // Predicated region
    $region6: #{tpu_custom_call.1} parent=1 // pred_check
      _
    $region7: #{tpu_custom_call.1} parent=1 // pred_check_branch
      %21 = sbr.rel (0) target = $region9
    $region8: #{tpu_custom_call.1} parent=1 // pred_region
      %22 = dma.done [#allocation5], 128
    $region9: #{tpu_custom_call.1} parent=1 // pred_fallthru
      _
    %p24 = scmp.eq.s32.totalorder 0, 0
    // Predicated region
    $region10: #{tpu_custom_call.1} parent=1 // pred_check
      %p25 = pneg %p24
    $region11: #{tpu_custom_call.1} parent=1 // pred_check_branch
      %27 = sbr.rel (%p25) target = $region13
    $region12: #{tpu_custom_call.1} parent=1 // pred_region
      %v28 = vlaneseq
      %v29 = vshrl.u32 %v28, 7
      %v30 = vadd.s32 %v29, 8
      %v31 = vadd.s32 %v29, 16
      %v32 = vadd.s32 %v29, 24
      %v33 = vadd.s32 %v29, 32
      %v34 = vadd.s32 %v29, 40
      %v35 = vadd.s32 %v29, 48
      %v36 = vadd.s32 %v29, 56
      %v37 = vadd.s32 %v29, 64
      %v38 = vadd.s32 %v29, 72
      %v39 = vadd.s32 %v29, 80
      %v40 = vadd.s32 %v29, 88
      %v41 = vadd.s32 %v29, 96
      %v42 = vadd.s32 %v29, 104
      %v43 = vadd.s32 %v29, 112
      %v44 = vadd.s32 %v29, 120
      %v45 = vlaneseq
      %v46 = vand.u32 %v45, 127
      %vm47 = vcmp.le.s32.totalorder %v29, %v46
      %vm48 = vcmp.le.s32.totalorder %v30, %v46
      %vm49 = vcmp.le.s32.totalorder %v31, %v46
      %vm50 = vcmp.le.s32.totalorder %v32, %v46
      %vm51 = vcmp.le.s32.totalorder %v33, %v46
      %vm52 = vcmp.le.s32.totalorder %v34, %v46
      %vm53 = vcmp.le.s32.totalorder %v35, %v46
      %vm54 = vcmp.le.s32.totalorder %v36, %v46
      %vm55 = vcmp.le.s32.totalorder %v37, %v46
      %vm56 = vcmp.le.s32.totalorder %v38, %v46
      %vm57 = vcmp.le.s32.totalorder %v39, %v46
      %vm58 = vcmp.le.s32.totalorder %v40, %v46
      %vm59 = vcmp.le.s32.totalorder %v41, %v46
      %vm60 = vcmp.le.s32.totalorder %v42, %v46
      %vm61 = vcmp.le.s32.totalorder %v43, %v46
      %vm62 = vcmp.le.s32.totalorder %v44, %v46
      %v63 = vsel %vm47, 1, 0
      %v64 = vsel %vm48, 1, 0
      %v65 = vsel %vm49, 1, 0
      %v66 = vsel %vm50, 1, 0
      %v67 = vsel %vm51, 1, 0
      %v68 = vsel %vm52, 1, 0
      %v69 = vsel %vm53, 1, 0
      %v70 = vsel %vm54, 1, 0
      %v71 = vsel %vm55, 1, 0
      %v72 = vsel %vm56, 1, 0
      %v73 = vsel %vm57, 1, 0
      %v74 = vsel %vm58, 1, 0
      %v75 = vsel %vm59, 1, 0
      %v76 = vsel %vm60, 1, 0
      %v77 = vsel %vm61, 1, 0
      %v78 = vsel %vm62, 1, 0
      %v79 = vcvt.s32.f32 %v63
      %v80 = vcvt.s32.f32 %v64
      %v81 = vcvt.s32.f32 %v65
      %v82 = vcvt.s32.f32 %v66
      %v83 = vcvt.s32.f32 %v67
      %v84 = vcvt.s32.f32 %v68
      %v85 = vcvt.s32.f32 %v69
      %v86 = vcvt.s32.f32 %v70
      %v87 = vcvt.s32.f32 %v71
      %v88 = vcvt.s32.f32 %v72
      %v89 = vcvt.s32.f32 %v73
      %v90 = vcvt.s32.f32 %v74
      %v91 = vcvt.s32.f32 %v75
      %v92 = vcvt.s32.f32 %v76
      %v93 = vcvt.s32.f32 %v77
      %v94 = vcvt.s32.f32 %v78
      %v95 = vpack.c.bf16 %v80, %v79
      %v96 = vpack.c.bf16 %v82, %v81
      %v97 = vpack.c.bf16 %v84, %v83
      %v98 = vpack.c.bf16 %v86, %v85
      %v99 = vpack.c.bf16 %v88, %v87
      %v100 = vpack.c.bf16 %v90, %v89
      %v101 = vpack.c.bf16 %v92, %v91
      %v102 = vpack.c.bf16 %v94, %v93
      %103 = vst [vmem:[#allocation2] sm:$0xff] %v95
      %104 = vst [vmem:[#allocation2 + $0x8] sm:$0xff] %v96
      %105 = vst [vmem:[#allocation2 + $0x10] sm:$0xff] %v97
      %106 = vst [vmem:[#allocation2 + $0x18] sm:$0xff] %v98
      %107 = vst [vmem:[#allocation2 + $0x20] sm:$0xff] %v99
      %108 = vst [vmem:[#allocation2 + $0x28] sm:$0xff] %v100
      %109 = vst [vmem:[#allocation2 + $0x30] sm:$0xff] %v101
      %110 = vst [vmem:[#allocation2 + $0x38] sm:$0xff] %v102
    $region13: #{tpu_custom_call.1} parent=1 // pred_fallthru
      _
    %v111 = vld [vmem:[#allocation4] sm:$0xff]
    %vm112 = vcmp.ne.f32.partialorder %v111, 0.0
    %v113 = vsel %vm112, 1, 0
    %v114 = vcvt.s32.f32 %v113
    %v115 = vpack.c.bf16 %v114, %v114
    %v116 = vld [vmem:[#allocation2] sm:$0xff]
    %v117 = vld [vmem:[#allocation2 + $0x8] sm:$0xff]
    %v118 = vld [vmem:[#allocation2 + $0x10] sm:$0xff]
    %v119 = vld [vmem:[#allocation2 + $0x18] sm:$0xff]
    %v120 = vld [vmem:[#allocation2 + $0x20] sm:$0xff]
    %v121 = vld [vmem:[#allocation2 + $0x28] sm:$0xff]
    %v122 = vld [vmem:[#allocation2 + $0x30] sm:$0xff]
    %v123 = vld [vmem:[#allocation2 + $0x38] sm:$0xff]
    %124 = vmatprep.subr.bf16.mxu0 0
    %125 = vmatpush1.bf16.msra.mxu0 %v116
    %126 = vmatprep.subr.bf16.mxu0 0
    %127 = vmatpush1.bf16.msra.mxu0 %v117
    %128 = vmatprep.subr.bf16.mxu0 0
    %129 = vmatpush1.bf16.msra.mxu0 %v118
    %130 = vmatprep.subr.bf16.mxu0 0
    %131 = vmatpush1.bf16.msra.mxu0 %v119
    %132 = vmatprep.subr.bf16.mxu0 0
    %133 = vmatpush1.bf16.msra.mxu0 %v120
    %134 = vmatprep.subr.bf16.mxu0 0
    %135 = vmatpush1.bf16.msra.mxu0 %v121
    %136 = vmatprep.subr.bf16.mxu0 0
    %137 = vmatpush1.bf16.msra.mxu0 %v122
    %138 = vmatprep.subr.bf16.mxu0 0
    %139 = vmatpush1.bf16.msra.mxu0 %v123
    %140 = vmatprep.subr.bf16.mxu0 0
    %141 = vmatpush1.bf16.msra.mxu0 0
    %142 = vmatprep.subr.bf16.mxu0 0
    %143 = vmatpush1.bf16.msra.mxu0 0
    %144 = vmatprep.subr.bf16.mxu0 0
    %145 = vmatpush1.bf16.msra.mxu0 0
    %146 = vmatprep.subr.bf16.mxu0 0
    %147 = vmatpush1.bf16.msra.mxu0 0
    %148 = vmatprep.subr.bf16.mxu0 0
    %149 = vmatpush1.bf16.msra.mxu0 0
    %150 = vmatprep.subr.bf16.mxu0 0
    %151 = vmatpush1.bf16.msra.mxu0 0
    %152 = vmatprep.subr.bf16.mxu0 0
    %153 = vmatpush1.bf16.msra.mxu0 0
    %154 = vmatprep.subr.bf16.mxu0 0
    %155 = vmatpush1.bf16.msra.mxu0 0
    %156 = vmatprep.mubr.bf16.mxu0 0
    %157 = vmatmul.mubr.bf16.gmra.mrb[0].mxu0 %v115
    %v158 = vpop.f32.mrb[0].mxu0
    %v159 = vadd.f32 0.0, %v158
    %v160 = vpop.f32.mrb[0].mxu0
    %v161 = vpop.f32.mrb[0].mxu0
    %v162 = vpop.f32.mrb[0].mxu0
    %163 = vdwg.mxu0
    %164 = vst [vmem:[#allocation3] sm:$0xff] %v159
    %165 = vmax.xlane.f32.xlu0 %v159
    %v166 = vpop.xlane.xlu0 %165
    %v167 = vcvt.f32.s32.to.zero.pseudo %v166
    %vm168 = vcmask 7168
    %169 = vst.msk [vmem:[%s2] sm:$0xff] %vm168, %v167
    %v170 = vrot.slane %v167, 4
    %vm171 = vcmp.gt.s32.totalorder %v167, %v170
    %v172 = vsel %vm171, %v167, %v170
    %v173 = vrot.slane %v172, 2
    %vm174 = vcmp.gt.s32.totalorder %v172, %v173
    %v175 = vsel %vm174, %v172, %v173
    %v176 = vrot.slane %v175, 1
    %vm177 = vcmp.gt.s32.totalorder %v175, %v176
    %v178 = vsel %vm177, %v175, %v176
    %s179 = vtos %v178
    %v180 = vlaneseq
    %v181 = vshrl.u32 %v180, 7
    %v182 = vadd.s32 %v181, 8
    %v183 = vadd.s32 %v181, 16
    %v184 = vadd.s32 %v181, 24
    %v185 = vadd.s32 %v181, 32
    %v186 = vadd.s32 %v181, 40
    %v187 = vadd.s32 %v181, 48
    %v188 = vadd.s32 %v181, 56
    %v189 = vadd.s32 %v181, 64
    %v190 = vadd.s32 %v181, 72
    %v191 = vadd.s32 %v181, 80
    %v192 = vadd.s32 %v181, 88
    %v193 = vadd.s32 %v181, 96
    %v194 = vadd.s32 %v181, 104
    %v195 = vadd.s32 %v181, 112
    %v196 = vadd.s32 %v181, 120
    %v197 = vlaneseq
    %v198 = vand.u32 %v197, 127
    %199 = vst [vmem:[#allocation7] sm:$0xff] 4294967295
    %p200 = scmp.gt.s32.totalorder %s179, 0
    // Predicated region
    $region14: #{tpu_custom_call.1} parent=1 // pred_check
      %p201 = pneg %p200
    $region15: #{tpu_custom_call.1} parent=1 // pred_check_branch
      %203 = sbr.rel (%p201) target = $region17
    $region16: #{tpu_custom_call.1} parent=1 // pred_region
      %v204 = vcvt.s32.f32 %v181
      %v205 = vcvt.s32.f32 %v182
      %v206 = vcvt.s32.f32 %v183
      %v207 = vcvt.s32.f32 %v184
      %v208 = vcvt.s32.f32 %v185
      %v209 = vcvt.s32.f32 %v186
      %v210 = vcvt.s32.f32 %v187
      %v211 = vcvt.s32.f32 %v188
      %v212 = vcvt.s32.f32 %v189
      %v213 = vcvt.s32.f32 %v190
      %v214 = vcvt.s32.f32 %v191
      %v215 = vcvt.s32.f32 %v192
      %v216 = vcvt.s32.f32 %v193
      %v217 = vcvt.s32.f32 %v194
      %v218 = vcvt.s32.f32 %v195
      %v219 = vcvt.s32.f32 %v196
      %v220 = vld [vmem:[#allocation3] sm:$0xff]
      %v222 = vcombine.high %v220, %v220
      %v224 = vunpack.c.l.s4 1966171168
      %v225 = vunpack.c.0.s8 %v224
      %v226 = vlaneseq
      %v227 = vshrl.u32 %v226, 7
      %v228 = vsub.s32 %v225, %v227
      %v229 = vrot.slane %v220, %v228
      %v231 = vunpack.c.l.s4 1966171168
      %v232 = vunpack.c.0.s8 %v231
      %v233 = vlaneseq
      %v234 = vshrl.u32 %v233, 7
      %v235 = vsub.s32 %v232, %v234
      %v236 = vrot.slane %v222, %v235
      %v237 = vcombine.high %v229, %v229
      %v238 = vcombine.high %v236, %v236
      %v240 = vunpack.c.l.s4 1966171168
      %v241 = vunpack.c.0.s8 %v240
      %v242 = vlaneseq
      %v243 = vshrl.u32 %v242, 7
      %v244 = vsub.s32 %v241, %v243
      %v245 = vrot.slane %v229, %v244
      %v247 = vunpack.c.l.s4 1966171168
      %v248 = vunpack.c.0.s8 %v247
      %v249 = vlaneseq
      %v250 = vshrl.u32 %v249, 7
      %v251 = vsub.s32 %v248, %v250
      %v252 = vrot.slane %v236, %v251
      %v254 = vunpack.c.l.s4 1966171168
      %v255 = vunpack.c.0.s8 %v254
      %v256 = vlaneseq
      %v257 = vshrl.u32 %v256, 7
      %v258 = vsub.s32 %v255, %v257
      %v259 = vrot.slane %v237, %v258
      %v261 = vunpack.c.l.s4 1966171168
      %v262 = vunpack.c.0.s8 %v261
      %v263 = vlaneseq
      %v264 = vshrl.u32 %v263, 7
      %v265 = vsub.s32 %v262, %v264
      %v266 = vrot.slane %v238, %v265
      %v267 = vcombine.high %v245, %v245
      %v268 = vcombine.high %v252, %v252
      %v269 = vcombine.high %v259, %v259
      %v270 = vcombine.high %v266, %v266
      %v271 = vlaneseq
      %v272 = vshrl.u32 %v271, 7
      %v273 = vsub.s32 0, %v272
      %v274 = vrot.slane %v245, %v273
      %v275 = vlaneseq
      %v276 = vshrl.u32 %v275, 7
      %v277 = vsub.s32 0, %v276
      %v278 = vrot.slane %v259, %v277
      %v279 = vlaneseq
      %v280 = vshrl.u32 %v279, 7
      %v281 = vsub.s32 0, %v280
      %v282 = vrot.slane %v267, %v281
      %v283 = vlaneseq
      %v284 = vshrl.u32 %v283, 7
      %v285 = vsub.s32 0, %v284
      %v286 = vrot.slane %v269, %v285
      %v287 = vlaneseq
      %v288 = vshrl.u32 %v287, 7
      %v289 = vsub.s32 0, %v288
      %v290 = vrot.slane %v252, %v289
      %v291 = vlaneseq
      %v292 = vshrl.u32 %v291, 7
      %v293 = vsub.s32 0, %v292
      %v294 = vrot.slane %v266, %v293
      %v295 = vlaneseq
      %v296 = vshrl.u32 %v295, 7
      %v297 = vsub.s32 0, %v296
      %v298 = vrot.slane %v268, %v297
      %v299 = vlaneseq
      %v300 = vshrl.u32 %v299, 7
      %v301 = vsub.s32 0, %v300
      %v302 = vrot.slane %v270, %v301
      %vm311 = vcmp.le.f32.partialorder %v274, %v204
      %vm312 = vcmp.le.f32.partialorder %v274, %v205
      %vm313 = vcmp.le.f32.partialorder %v274, %v206
      %vm314 = vcmp.le.f32.partialorder %v274, %v207
      %vm315 = vcmp.le.f32.partialorder %v274, %v208
      %vm316 = vcmp.le.f32.partialorder %v274, %v209
      %vm317 = vcmp.le.f32.partialorder %v274, %v210
      %vm318 = vcmp.le.f32.partialorder %v274, %v211
      %vm319 = vcmp.le.f32.partialorder %v274, %v212
      %vm320 = vcmp.le.f32.partialorder %v274, %v213
      %vm321 = vcmp.le.f32.partialorder %v274, %v214
      %vm322 = vcmp.le.f32.partialorder %v274, %v215
      %vm323 = vcmp.le.f32.partialorder %v274, %v216
      %vm324 = vcmp.le.f32.partialorder %v274, %v217
      %vm325 = vcmp.le.f32.partialorder %v274, %v218
      %vm326 = vcmp.le.f32.partialorder %v274, %v219
      %vm327 = vcmp.le.f32.partialorder %v278, %v204
      %vm328 = vcmp.le.f32.partialorder %v278, %v205
      %vm329 = vcmp.le.f32.partialorder %v278, %v206
      %vm330 = vcmp.le.f32.partialorder %v278, %v207
      %vm331 = vcmp.le.f32.partialorder %v278, %v208
      %vm332 = vcmp.le.f32.partialorder %v278, %v209
      %vm333 = vcmp.le.f32.partialorder %v278, %v210
      %vm334 = vcmp.le.f32.partialorder %v278, %v211
      %vm335 = vcmp.le.f32.partialorder %v278, %v212
      %vm336 = vcmp.le.f32.partialorder %v278, %v213
      %vm337 = vcmp.le.f32.partialorder %v278, %v214
      %vm338 = vcmp.le.f32.partialorder %v278, %v215
      %vm339 = vcmp.le.f32.partialorder %v278, %v216
      %vm340 = vcmp.le.f32.partialorder %v278, %v217
      %vm341 = vcmp.le.f32.partialorder %v278, %v218
      %vm342 = vcmp.le.f32.partialorder %v278, %v219
      %vm343 = vcmp.le.f32.partialorder %v282, %v204
      %vm344 = vcmp.le.f32.partialorder %v282, %v205
      %vm345 = vcmp.le.f32.partialorder %v282, %v206
      %vm346 = vcmp.le.f32.partialorder %v282, %v207
      %vm347 = vcmp.le.f32.partialorder %v282, %v208
      %vm348 = vcmp.le.f32.partialorder %v282, %v209
      %vm349 = vcmp.le.f32.partialorder %v282, %v210
      %vm350 = vcmp.le.f32.partialorder %v282, %v211
      %vm351 = vcmp.le.f32.partialorder %v282, %v212
      %vm352 = vcmp.le.f32.partialorder %v282, %v213
      %vm353 = vcmp.le.f32.partialorder %v282, %v214
      %vm354 = vcmp.le.f32.partialorder %v282, %v215
      %vm355 = vcmp.le.f32.partialorder %v282, %v216
      %vm356 = vcmp.le.f32.partialorder %v282, %v217
      %vm357 = vcmp.le.f32.partialorder %v282, %v218
      %vm358 = vcmp.le.f32.partialorder %v282, %v219
      %vm359 = vcmp.le.f32.partialorder %v286, %v204
      %vm360 = vcmp.le.f32.partialorder %v286, %v205
      %vm361 = vcmp.le.f32.partialorder %v286, %v206
      %vm362 = vcmp.le.f32.partialorder %v286, %v207
      %vm363 = vcmp.le.f32.partialorder %v286, %v208
      %vm364 = vcmp.le.f32.partialorder %v286, %v209
      %vm365 = vcmp.le.f32.partialorder %v286, %v210
      %vm366 = vcmp.le.f32.partialorder %v286, %v211
      %vm367 = vcmp.le.f32.partialorder %v286, %v212
      %vm368 = vcmp.le.f32.partialorder %v286, %v213
      %vm369 = vcmp.le.f32.partialorder %v286, %v214
      %vm370 = vcmp.le.f32.partialorder %v286, %v215
      %vm371 = vcmp.le.f32.partialorder %v286, %v216
      %vm372 = vcmp.le.f32.partialorder %v286, %v217
      %vm373 = vcmp.le.f32.partialorder %v286, %v218
      %vm374 = vcmp.le.f32.partialorder %v286, %v219
      %vm375 = vcmp.le.f32.partialorder %v290, %v204
      %vm376 = vcmp.le.f32.partialorder %v290, %v205
      %vm377 = vcmp.le.f32.partialorder %v290, %v206
      %vm378 = vcmp.le.f32.partialorder %v290, %v207
      %vm379 = vcmp.le.f32.partialorder %v290, %v208
      %vm380 = vcmp.le.f32.partialorder %v290, %v209
      %vm381 = vcmp.le.f32.partialorder %v290, %v210
      %vm382 = vcmp.le.f32.partialorder %v290, %v211
      %vm383 = vcmp.le.f32.partialorder %v290, %v212
      %vm384 = vcmp.le.f32.partialorder %v290, %v213
      %vm385 = vcmp.le.f32.partialorder %v290, %v214
      %vm386 = vcmp.le.f32.partialorder %v290, %v215
      %vm387 = vcmp.le.f32.partialorder %v290, %v216
      %vm388 = vcmp.le.f32.partialorder %v290, %v217
      %vm389 = vcmp.le.f32.partialorder %v290, %v218
      %vm390 = vcmp.le.f32.partialorder %v290, %v219
      %vm391 = vcmp.le.f32.partialorder %v294, %v204
      %vm392 = vcmp.le.f32.partialorder %v294, %v205
      %vm393 = vcmp.le.f32.partialorder %v294, %v206
      %vm394 = vcmp.le.f32.partialorder %v294, %v207
      %vm395 = vcmp.le.f32.partialorder %v294, %v208
      %vm396 = vcmp.le.f32.partialorder %v294, %v209
      %vm397 = vcmp.le.f32.partialorder %v294, %v210
      %vm398 = vcmp.le.f32.partialorder %v294, %v211
      %vm399 = vcmp.le.f32.partialorder %v294, %v212
      %vm400 = vcmp.le.f32.partialorder %v294, %v213
      %vm401 = vcmp.le.f32.partialorder %v294, %v214
      %vm402 = vcmp.le.f32.partialorder %v294, %v215
      %vm403 = vcmp.le.f32.partialorder %v294, %v216
      %vm404 = vcmp.le.f32.partialorder %v294, %v217
      %vm405 = vcmp.le.f32.partialorder %v294, %v218
      %vm406 = vcmp.le.f32.partialorder %v294, %v219
      %vm407 = vcmp.le.f32.partialorder %v298, %v204
      %vm408 = vcmp.le.f32.partialorder %v298, %v205
      %vm409 = vcmp.le.f32.partialorder %v298, %v206
      %vm410 = vcmp.le.f32.partialorder %v298, %v207
      %vm411 = vcmp.le.f32.partialorder %v298, %v208
      %vm412 = vcmp.le.f32.partialorder %v298, %v209
      %vm413 = vcmp.le.f32.partialorder %v298, %v210
      %vm414 = vcmp.le.f32.partialorder %v298, %v211
      %vm415 = vcmp.le.f32.partialorder %v298, %v212
      %vm416 = vcmp.le.f32.partialorder %v298, %v213
      %vm417 = vcmp.le.f32.partialorder %v298, %v214
      %vm418 = vcmp.le.f32.partialorder %v298, %v215
      %vm419 = vcmp.le.f32.partialorder %v298, %v216
      %vm420 = vcmp.le.f32.partialorder %v298, %v217
      %vm421 = vcmp.le.f32.partialorder %v298, %v218
      %vm422 = vcmp.le.f32.partialorder %v298, %v219
      %vm423 = vcmp.le.f32.partialorder %v302, %v204
      %vm424 = vcmp.le.f32.partialorder %v302, %v205
      %vm425 = vcmp.le.f32.partialorder %v302, %v206
      %vm426 = vcmp.le.f32.partialorder %v302, %v207
      %vm427 = vcmp.le.f32.partialorder %v302, %v208
      %vm428 = vcmp.le.f32.partialorder %v302, %v209
      %vm429 = vcmp.le.f32.partialorder %v302, %v210
      %vm430 = vcmp.le.f32.partialorder %v302, %v211
      %vm431 = vcmp.le.f32.partialorder %v302, %v212
      %vm432 = vcmp.le.f32.partialorder %v302, %v213
      %vm433 = vcmp.le.f32.partialorder %v302, %v214
      %vm434 = vcmp.le.f32.partialorder %v302, %v215
      %vm435 = vcmp.le.f32.partialorder %v302, %v216
      %vm436 = vcmp.le.f32.partialorder %v302, %v217
      %vm437 = vcmp.le.f32.partialorder %v302, %v218
      %vm438 = vcmp.le.f32.partialorder %v302, %v219
      %v439 = vsel %vm311, 1, 0
      %v440 = vsel %vm312, 1, 0
      %v441 = vsel %vm313, 1, 0
      %v442 = vsel %vm314, 1, 0
      %v443 = vsel %vm315, 1, 0
      %v444 = vsel %vm316, 1, 0
      %v445 = vsel %vm317, 1, 0
      %v446 = vsel %vm318, 1, 0
      %v447 = vsel %vm319, 1, 0
      %v448 = vsel %vm320, 1, 0
      %v449 = vsel %vm321, 1, 0
      %v450 = vsel %vm322, 1, 0
      %v451 = vsel %vm323, 1, 0
      %v452 = vsel %vm324, 1, 0
      %v453 = vsel %vm325, 1, 0
      %v454 = vsel %vm326, 1, 0
      %v455 = vsel %vm327, 1, 0
      %v456 = vsel %vm328, 1, 0
      %v457 = vsel %vm329, 1, 0
      %v458 = vsel %vm330, 1, 0
      %v459 = vsel %vm331, 1, 0
      %v460 = vsel %vm332, 1, 0
      %v461 = vsel %vm333, 1, 0
      %v462 = vsel %vm334, 1, 0
      %v463 = vsel %vm335, 1, 0
      %v464 = vsel %vm336, 1, 0
      %v465 = vsel %vm337, 1, 0
      %v466 = vsel %vm338, 1, 0
      %v467 = vsel %vm339, 1, 0
      %v468 = vsel %vm340, 1, 0
      %v469 = vsel %vm341, 1, 0
      %v470 = vsel %vm342, 1, 0
      %v471 = vsel %vm343, 1, 0
      %v472 = vsel %vm344, 1, 0
      %v473 = vsel %vm345, 1, 0
      %v474 = vsel %vm346, 1, 0
      %v475 = vsel %vm347, 1, 0
      %v476 = vsel %vm348, 1, 0
      %v477 = vsel %vm349, 1, 0
      %v478 = vsel %vm350, 1, 0
      %v479 = vsel %vm351, 1, 0
      %v480 = vsel %vm352, 1, 0
      %v481 = vsel %vm353, 1, 0
      %v482 = vsel %vm354, 1, 0
      %v483 = vsel %vm355, 1, 0
      %v484 = vsel %vm356, 1, 0
      %v485 = vsel %vm357, 1, 0
      %v486 = vsel %vm358, 1, 0
      %v487 = vsel %vm359, 1, 0
      %v488 = vsel %vm360, 1, 0
      %v489 = vsel %vm361, 1, 0
      %v490 = vsel %vm362, 1, 0
      %v491 = vsel %vm363, 1, 0
      %v492 = vsel %vm364, 1, 0
      %v493 = vsel %vm365, 1, 0
      %v494 = vsel %vm366, 1, 0
      %v495 = vsel %vm367, 1, 0
      %v496 = vsel %vm368, 1, 0
      %v497 = vsel %vm369, 1, 0
      %v498 = vsel %vm370, 1, 0
      %v499 = vsel %vm371, 1, 0
      %v500 = vsel %vm372, 1, 0
      %v501 = vsel %vm373, 1, 0
      %v502 = vsel %vm374, 1, 0
      %v503 = vsel %vm375, 1, 0
      %v504 = vsel %vm376, 1, 0
      %v505 = vsel %vm377, 1, 0
      %v506 = vsel %vm378, 1, 0
      %v507 = vsel %vm379, 1, 0
      %v508 = vsel %vm380, 1, 0
      %v509 = vsel %vm381, 1, 0
      %v510 = vsel %vm382, 1, 0
      %v511 = vsel %vm383, 1, 0
      %v512 = vsel %vm384, 1, 0
      %v513 = vsel %vm385, 1, 0
      %v514 = vsel %vm386, 1, 0
      %v515 = vsel %vm387, 1, 0
      %v516 = vsel %vm388, 1, 0
      %v517 = vsel %vm389, 1, 0
      %v518 = vsel %vm390, 1, 0
      %v519 = vsel %vm391, 1, 0
      %v520 = vsel %vm392, 1, 0
      %v521 = vsel %vm393, 1, 0
      %v522 = vsel %vm394, 1, 0
      %v523 = vsel %vm395, 1, 0
      %v524 = vsel %vm396, 1, 0
      %v525 = vsel %vm397, 1, 0
      %v526 = vsel %vm398, 1, 0
      %v527 = vsel %vm399, 1, 0
      %v528 = vsel %vm400, 1, 0
      %v529 = vsel %vm401, 1, 0
      %v530 = vsel %vm402, 1, 0
      %v531 = vsel %vm403, 1, 0
      %v532 = vsel %vm404, 1, 0
      %v533 = vsel %vm405, 1, 0
      %v534 = vsel %vm406, 1, 0
      %v535 = vsel %vm407, 1, 0
      %v536 = vsel %vm408, 1, 0
      %v537 = vsel %vm409, 1, 0
      %v538 = vsel %vm410, 1, 0
      %v539 = vsel %vm411, 1, 0
      %v540 = vsel %vm412, 1, 0
      %v541 = vsel %vm413, 1, 0
      %v542 = vsel %vm414, 1, 0
      %v543 = vsel %vm415, 1, 0
      %v544 = vsel %vm416, 1, 0
      %v545 = vsel %vm417, 1, 0
      %v546 = vsel %vm418, 1, 0
      %v547 = vsel %vm419, 1, 0
      %v548 = vsel %vm420, 1, 0
      %v549 = vsel %vm421, 1, 0
      %v550 = vsel %vm422, 1, 0
      %v551 = vsel %vm423, 1, 0
      %v552 = vsel %vm424, 1, 0
      %v553 = vsel %vm425, 1, 0
      %v554 = vsel %vm426, 1, 0
      %v555 = vsel %vm427, 1, 0
      %v556 = vsel %vm428, 1, 0
      %v557 = vsel %vm429, 1, 0
      %v558 = vsel %vm430, 1, 0
      %v559 = vsel %vm431, 1, 0
      %v560 = vsel %vm432, 1, 0
      %v561 = vsel %vm433, 1, 0
      %v562 = vsel %vm434, 1, 0
      %v563 = vsel %vm435, 1, 0
      %v564 = vsel %vm436, 1, 0
      %v565 = vsel %vm437, 1, 0
      %v566 = vsel %vm438, 1, 0
      %v567 = vcvt.s32.f32 %v439
      %v568 = vcvt.s32.f32 %v440
      %v569 = vcvt.s32.f32 %v441
      %v570 = vcvt.s32.f32 %v442
      %v571 = vcvt.s32.f32 %v443
      %v572 = vcvt.s32.f32 %v444
      %v573 = vcvt.s32.f32 %v445
      %v574 = vcvt.s32.f32 %v446
      %v575 = vcvt.s32.f32 %v447
      %v576 = vcvt.s32.f32 %v448
      %v577 = vcvt.s32.f32 %v449
      %v578 = vcvt.s32.f32 %v450
      %v579 = vcvt.s32.f32 %v451
      %v580 = vcvt.s32.f32 %v452
      %v581 = vcvt.s32.f32 %v453
      %v582 = vcvt.s32.f32 %v454
      %v583 = vcvt.s32.f32 %v455
      %v584 = vcvt.s32.f32 %v456
      %v585 = vcvt.s32.f32 %v457
      %v586 = vcvt.s32.f32 %v458
      %v587 = vcvt.s32.f32 %v459
      %v588 = vcvt.s32.f32 %v460
      %v589 = vcvt.s32.f32 %v461
      %v590 = vcvt.s32.f32 %v462
      %v591 = vcvt.s32.f32 %v463
      %v592 = vcvt.s32.f32 %v464
      %v593 = vcvt.s32.f32 %v465
      %v594 = vcvt.s32.f32 %v466
      %v595 = vcvt.s32.f32 %v467
      %v596 = vcvt.s32.f32 %v468
      %v597 = vcvt.s32.f32 %v469
      %v598 = vcvt.s32.f32 %v470
      %v599 = vcvt.s32.f32 %v471
      %v600 = vcvt.s32.f32 %v472
      %v601 = vcvt.s32.f32 %v473
      %v602 = vcvt.s32.f32 %v474
      %v603 = vcvt.s32.f32 %v475
      %v604 = vcvt.s32.f32 %v476
      %v605 = vcvt.s32.f32 %v477
      %v606 = vcvt.s32.f32 %v478
      %v607 = vcvt.s32.f32 %v479
      %v608 = vcvt.s32.f32 %v480
      %v609 = vcvt.s32.f32 %v481
      %v610 = vcvt.s32.f32 %v482
      %v611 = vcvt.s32.f32 %v483
      %v612 = vcvt.s32.f32 %v484
      %v613 = vcvt.s32.f32 %v485
      %v614 = vcvt.s32.f32 %v486
      %v615 = vcvt.s32.f32 %v487
      %v616 = vcvt.s32.f32 %v488
      %v617 = vcvt.s32.f32 %v489
      %v618 = vcvt.s32.f32 %v490
      %v619 = vcvt.s32.f32 %v491
      %v620 = vcvt.s32.f32 %v492
      %v621 = vcvt.s32.f32 %v493
      %v622 = vcvt.s32.f32 %v494
      %v623 = vcvt.s32.f32 %v495
      %v624 = vcvt.s32.f32 %v496
      %v625 = vcvt.s32.f32 %v497
      %v626 = vcvt.s32.f32 %v498
      %v627 = vcvt.s32.f32 %v499
      %v628 = vcvt.s32.f32 %v500
      %v629 = vcvt.s32.f32 %v501
      %v630 = vcvt.s32.f32 %v502
      %v631 = vcvt.s32.f32 %v503
      %v632 = vcvt.s32.f32 %v504
      %v633 = vcvt.s32.f32 %v505
      %v634 = vcvt.s32.f32 %v506
      %v635 = vcvt.s32.f32 %v507
      %v636 = vcvt.s32.f32 %v508
      %v637 = vcvt.s32.f32 %v509
      %v638 = vcvt.s32.f32 %v510
      %v639 = vcvt.s32.f32 %v511
      %v640 = vcvt.s32.f32 %v512
      %v641 = vcvt.s32.f32 %v513
      %v642 = vcvt.s32.f32 %v514
      %v643 = vcvt.s32.f32 %v515
      %v644 = vcvt.s32.f32 %v516
      %v645 = vcvt.s32.f32 %v517
      %v646 = vcvt.s32.f32 %v518
      %v647 = vcvt.s32.f32 %v519
      %v648 = vcvt.s32.f32 %v520
      %v649 = vcvt.s32.f32 %v521
      %v650 = vcvt.s32.f32 %v522
      %v651 = vcvt.s32.f32 %v523
      %v652 = vcvt.s32.f32 %v524
      %v653 = vcvt.s32.f32 %v525
      %v654 = vcvt.s32.f32 %v526
      %v655 = vcvt.s32.f32 %v527
      %v656 = vcvt.s32.f32 %v528
      %v657 = vcvt.s32.f32 %v529
      %v658 = vcvt.s32.f32 %v530
      %v659 = vcvt.s32.f32 %v531
      %v660 = vcvt.s32.f32 %v532
      %v661 = vcvt.s32.f32 %v533
      %v662 = vcvt.s32.f32 %v534
      %v663 = vcvt.s32.f32 %v535
      %v664 = vcvt.s32.f32 %v536
      %v665 = vcvt.s32.f32 %v537
      %v666 = vcvt.s32.f32 %v538
      %v667 = vcvt.s32.f32 %v539
      %v668 = vcvt.s32.f32 %v540
      %v669 = vcvt.s32.f32 %v541
      %v670 = vcvt.s32.f32 %v542
      %v671 = vcvt.s32.f32 %v543
      %v672 = vcvt.s32.f32 %v544
      %v673 = vcvt.s32.f32 %v545
      %v674 = vcvt.s32.f32 %v546
      %v675 = vcvt.s32.f32 %v547
      %v676 = vcvt.s32.f32 %v548
      %v677 = vcvt.s32.f32 %v549
      %v678 = vcvt.s32.f32 %v550
      %v679 = vcvt.s32.f32 %v551
      %v680 = vcvt.s32.f32 %v552
      %v681 = vcvt.s32.f32 %v553
      %v682 = vcvt.s32.f32 %v554
      %v683 = vcvt.s32.f32 %v555
      %v684 = vcvt.s32.f32 %v556
      %v685 = vcvt.s32.f32 %v557
      %v686 = vcvt.s32.f32 %v558
      %v687 = vcvt.s32.f32 %v559
      %v688 = vcvt.s32.f32 %v560
      %v689 = vcvt.s32.f32 %v561
      %v690 = vcvt.s32.f32 %v562
      %v691 = vcvt.s32.f32 %v563
      %v692 = vcvt.s32.f32 %v564
      %v693 = vcvt.s32.f32 %v565
      %v694 = vcvt.s32.f32 %v566
      %695 = vadd.xlane.f32.xlu0 %v567
      %v696 = vpop.xlane.xlu0 %695
      %697 = vadd.xlane.f32.xlu0 %v568
      %v698 = vpop.xlane.xlu0 %697
      %699 = vadd.xlane.f32.xlu0 %v569
      %v700 = vpop.xlane.xlu0 %699
      %701 = vadd.xlane.f32.xlu0 %v570
      %v702 = vpop.xlane.xlu0 %701
      %703 = vadd.xlane.f32.xlu0 %v571
      %v704 = vpop.xlane.xlu0 %703
      %705 = vadd.xlane.f32.xlu0 %v572
      %v706 = vpop.xlane.xlu0 %705
      %707 = vadd.xlane.f32.xlu0 %v573
      %v708 = vpop.xlane.xlu0 %707
      %709 = vadd.xlane.f32.xlu0 %v574
      %v710 = vpop.xlane.xlu0 %709
      %711 = vadd.xlane.f32.xlu0 %v575
      %v712 = vpop.xlane.xlu0 %711
      %713 = vadd.xlane.f32.xlu0 %v576
      %v714 = vpop.xlane.xlu0 %713
      %715 = vadd.xlane.f32.xlu0 %v577
      %v716 = vpop.xlane.xlu0 %715
      %717 = vadd.xlane.f32.xlu0 %v578
      %v718 = vpop.xlane.xlu0 %717
      %719 = vadd.xlane.f32.xlu0 %v579
      %v720 = vpop.xlane.xlu0 %719
      %721 = vadd.xlane.f32.xlu0 %v580
      %v722 = vpop.xlane.xlu0 %721
      %723 = vadd.xlane.f32.xlu0 %v581
      %v724 = vpop.xlane.xlu0 %723
      %725 = vadd.xlane.f32.xlu0 %v582
      %v726 = vpop.xlane.xlu0 %725
      %727 = vadd.xlane.f32.xlu0 %v583
      %v728 = vpop.xlane.xlu0 %727
      %729 = vadd.xlane.f32.xlu0 %v584
      %v730 = vpop.xlane.xlu0 %729
      %731 = vadd.xlane.f32.xlu0 %v585
      %v732 = vpop.xlane.xlu0 %731
      %733 = vadd.xlane.f32.xlu0 %v586
      %v734 = vpop.xlane.xlu0 %733
      %735 = vadd.xlane.f32.xlu0 %v587
      %v736 = vpop.xlane.xlu0 %735
      %737 = vadd.xlane.f32.xlu0 %v588
      %v738 = vpop.xlane.xlu0 %737
      %739 = vadd.xlane.f32.xlu0 %v589
      %v740 = vpop.xlane.xlu0 %739
      %741 = vadd.xlane.f32.xlu0 %v590
      %v742 = vpop.xlane.xlu0 %741
      %743 = vadd.xlane.f32.xlu0 %v591
      %v744 = vpop.xlane.xlu0 %743
      %745 = vadd.xlane.f32.xlu0 %v592
      %v746 = vpop.xlane.xlu0 %745
      %747 = vadd.xlane.f32.xlu0 %v593
      %v748 = vpop.xlane.xlu0 %747
      %749 = vadd.xlane.f32.xlu0 %v594
      %v750 = vpop.xlane.xlu0 %749
      %751 = vadd.xlane.f32.xlu0 %v595
      %v752 = vpop.xlane.xlu0 %751
      %753 = vadd.xlane.f32.xlu0 %v596
      %v754 = vpop.xlane.xlu0 %753
      %755 = vadd.xlane.f32.xlu0 %v597
      %v756 = vpop.xlane.xlu0 %755
      %757 = vadd.xlane.f32.xlu0 %v598
      %v758 = vpop.xlane.xlu0 %757
      %759 = vadd.xlane.f32.xlu0 %v599
      %v760 = vpop.xlane.xlu0 %759
      %761 = vadd.xlane.f32.xlu0 %v600
      %v762 = vpop.xlane.xlu0 %761
      %763 = vadd.xlane.f32.xlu0 %v601
      %v764 = vpop.xlane.xlu0 %763
      %765 = vadd.xlane.f32.xlu0 %v602
      %v766 = vpop.xlane.xlu0 %765
      %767 = vadd.xlane.f32.xlu0 %v603
      %v768 = vpop.xlane.xlu0 %767
      %769 = vadd.xlane.f32.xlu0 %v604
      %v770 = vpop.xlane.xlu0 %769
      %771 = vadd.xlane.f32.xlu0 %v605
      %v772 = vpop.xlane.xlu0 %771
      %773 = vadd.xlane.f32.xlu0 %v606
      %v774 = vpop.xlane.xlu0 %773
      %775 = vadd.xlane.f32.xlu0 %v607
      %v776 = vpop.xlane.xlu0 %775
      %777 = vadd.xlane.f32.xlu0 %v608
      %v778 = vpop.xlane.xlu0 %777
      %779 = vadd.xlane.f32.xlu0 %v609
      %v780 = vpop.xlane.xlu0 %779
      %781 = vadd.xlane.f32.xlu0 %v610
      %v782 = vpop.xlane.xlu0 %781
      %783 = vadd.xlane.f32.xlu0 %v611
      %v784 = vpop.xlane.xlu0 %783
      %785 = vadd.xlane.f32.xlu0 %v612
      %v786 = vpop.xlane.xlu0 %785
      %787 = vadd.xlane.f32.xlu0 %v613
      %v788 = vpop.xlane.xlu0 %787
      %789 = vadd.xlane.f32.xlu0 %v614
      %v790 = vpop.xlane.xlu0 %789
      %791 = vadd.xlane.f32.xlu0 %v615
      %v792 = vpop.xlane.xlu0 %791
      %793 = vadd.xlane.f32.xlu0 %v616
      %v794 = vpop.xlane.xlu0 %793
      %795 = vadd.xlane.f32.xlu0 %v617
      %v796 = vpop.xlane.xlu0 %795
      %797 = vadd.xlane.f32.xlu0 %v618
      %v798 = vpop.xlane.xlu0 %797
      %799 = vadd.xlane.f32.xlu0 %v619
      %v800 = vpop.xlane.xlu0 %799
      %801 = vadd.xlane.f32.xlu0 %v620
      %v802 = vpop.xlane.xlu0 %801
      %803 = vadd.xlane.f32.xlu0 %v621
      %v804 = vpop.xlane.xlu0 %803
      %805 = vadd.xlane.f32.xlu0 %v622
      %v806 = vpop.xlane.xlu0 %805
      %807 = vadd.xlane.f32.xlu0 %v623
      %v808 = vpop.xlane.xlu0 %807
      %809 = vadd.xlane.f32.xlu0 %v624
      %v810 = vpop.xlane.xlu0 %809
      %811 = vadd.xlane.f32.xlu0 %v625
      %v812 = vpop.xlane.xlu0 %811
      %813 = vadd.xlane.f32.xlu0 %v626
      %v814 = vpop.xlane.xlu0 %813
      %815 = vadd.xlane.f32.xlu0 %v627
      %v816 = vpop.xlane.xlu0 %815
      %817 = vadd.xlane.f32.xlu0 %v628
      %v818 = vpop.xlane.xlu0 %817
      %819 = vadd.xlane.f32.xlu0 %v629
      %v820 = vpop.xlane.xlu0 %819
      %821 = vadd.xlane.f32.xlu0 %v630
      %v822 = vpop.xlane.xlu0 %821
      %823 = vadd.xlane.f32.xlu0 %v631
      %v824 = vpop.xlane.xlu0 %823
      %825 = vadd.xlane.f32.xlu0 %v632
      %v826 = vpop.xlane.xlu0 %825
      %827 = vadd.xlane.f32.xlu0 %v633
      %v828 = vpop.xlane.xlu0 %827
      %829 = vadd.xlane.f32.xlu0 %v634
      %v830 = vpop.xlane.xlu0 %829
      %831 = vadd.xlane.f32.xlu0 %v635
      %v832 = vpop.xlane.xlu0 %831
      %833 = vadd.xlane.f32.xlu0 %v636
      %v834 = vpop.xlane.xlu0 %833
      %835 = vadd.xlane.f32.xlu0 %v637
      %v836 = vpop.xlane.xlu0 %835
      %837 = vadd.xlane.f32.xlu0 %v638
      %v838 = vpop.xlane.xlu0 %837
      %839 = vadd.xlane.f32.xlu0 %v639
      %v840 = vpop.xlane.xlu0 %839
      %841 = vadd.xlane.f32.xlu0 %v640
      %v842 = vpop.xlane.xlu0 %841
      %843 = vadd.xlane.f32.xlu0 %v641
      %v844 = vpop.xlane.xlu0 %843
      %845 = vadd.xlane.f32.xlu0 %v642
      %v846 = vpop.xlane.xlu0 %845
      %847 = vadd.xlane.f32.xlu0 %v643
      %v848 = vpop.xlane.xlu0 %847
      %849 = vadd.xlane.f32.xlu0 %v644
      %v850 = vpop.xlane.xlu0 %849
      %851 = vadd.xlane.f32.xlu0 %v645
      %v852 = vpop.xlane.xlu0 %851
      %853 = vadd.xlane.f32.xlu0 %v646
      %v854 = vpop.xlane.xlu0 %853
      %855 = vadd.xlane.f32.xlu0 %v647
      %v856 = vpop.xlane.xlu0 %855
      %857 = vadd.xlane.f32.xlu0 %v648
      %v858 = vpop.xlane.xlu0 %857
      %859 = vadd.xlane.f32.xlu0 %v649
      %v860 = vpop.xlane.xlu0 %859
      %861 = vadd.xlane.f32.xlu0 %v650
      %v862 = vpop.xlane.xlu0 %861
      %863 = vadd.xlane.f32.xlu0 %v651
      %v864 = vpop.xlane.xlu0 %863
      %865 = vadd.xlane.f32.xlu0 %v652
      %v866 = vpop.xlane.xlu0 %865
      %867 = vadd.xlane.f32.xlu0 %v653
      %v868 = vpop.xlane.xlu0 %867
      %869 = vadd.xlane.f32.xlu0 %v654
      %v870 = vpop.xlane.xlu0 %869
      %871 = vadd.xlane.f32.xlu0 %v655
      %v872 = vpop.xlane.xlu0 %871
      %873 = vadd.xlane.f32.xlu0 %v656
      %v874 = vpop.xlane.xlu0 %873
      %875 = vadd.xlane.f32.xlu0 %v657
      %v876 = vpop.xlane.xlu0 %875
      %877 = vadd.xlane.f32.xlu0 %v658
      %v878 = vpop.xlane.xlu0 %877
      %879 = vadd.xlane.f32.xlu0 %v659
      %v880 = vpop.xlane.xlu0 %879
      %881 = vadd.xlane.f32.xlu0 %v660
      %v882 = vpop.xlane.xlu0 %881
      %883 = vadd.xlane.f32.xlu0 %v661
      %v884 = vpop.xlane.xlu0 %883
      %885 = vadd.xlane.f32.xlu0 %v662
      %v886 = vpop.xlane.xlu0 %885
      %887 = vadd.xlane.f32.xlu0 %v663
      %v888 = vpop.xlane.xlu0 %887
      %889 = vadd.xlane.f32.xlu0 %v664
      %v890 = vpop.xlane.xlu0 %889
      %891 = vadd.xlane.f32.xlu0 %v665
      %v892 = vpop.xlane.xlu0 %891
      %893 = vadd.xlane.f32.xlu0 %v666
      %v894 = vpop.xlane.xlu0 %893
      %895 = vadd.xlane.f32.xlu0 %v667
      %v896 = vpop.xlane.xlu0 %895
      %897 = vadd.xlane.f32.xlu0 %v668
      %v898 = vpop.xlane.xlu0 %897
      %899 = vadd.xlane.f32.xlu0 %v669
      %v900 = vpop.xlane.xlu0 %899
      %901 = vadd.xlane.f32.xlu0 %v670
      %v902 = vpop.xlane.xlu0 %901
      %903 = vadd.xlane.f32.xlu0 %v671
      %v904 = vpop.xlane.xlu0 %903
      %905 = vadd.xlane.f32.xlu0 %v672
      %v906 = vpop.xlane.xlu0 %905
      %907 = vadd.xlane.f32.xlu0 %v673
      %v908 = vpop.xlane.xlu0 %907
      %909 = vadd.xlane.f32.xlu0 %v674
      %v910 = vpop.xlane.xlu0 %909
      %911 = vadd.xlane.f32.xlu0 %v675
      %v912 = vpop.xlane.xlu0 %911
      %913 = vadd.xlane.f32.xlu0 %v676
      %v914 = vpop.xlane.xlu0 %913
      %915 = vadd.xlane.f32.xlu0 %v677
      %v916 = vpop.xlane.xlu0 %915
      %917 = vadd.xlane.f32.xlu0 %v678
      %v918 = vpop.xlane.xlu0 %917
      %919 = vadd.xlane.f32.xlu0 %v679
      %v920 = vpop.xlane.xlu0 %919
      %921 = vadd.xlane.f32.xlu0 %v680
      %v922 = vpop.xlane.xlu0 %921
      %923 = vadd.xlane.f32.xlu0 %v681
      %v924 = vpop.xlane.xlu0 %923
      %925 = vadd.xlane.f32.xlu0 %v682
      %v926 = vpop.xlane.xlu0 %925
      %927 = vadd.xlane.f32.xlu0 %v683
      %v928 = vpop.xlane.xlu0 %927
      %929 = vadd.xlane.f32.xlu0 %v684
      %v930 = vpop.xlane.xlu0 %929
      %931 = vadd.xlane.f32.xlu0 %v685
      %v932 = vpop.xlane.xlu0 %931
      %933 = vadd.xlane.f32.xlu0 %v686
      %v934 = vpop.xlane.xlu0 %933
      %935 = vadd.xlane.f32.xlu0 %v687
      %v936 = vpop.xlane.xlu0 %935
      %937 = vadd.xlane.f32.xlu0 %v688
      %v938 = vpop.xlane.xlu0 %937
      %939 = vadd.xlane.f32.xlu0 %v689
      %v940 = vpop.xlane.xlu0 %939
      %941 = vadd.xlane.f32.xlu0 %v690
      %v942 = vpop.xlane.xlu0 %941
      %943 = vadd.xlane.f32.xlu0 %v691
      %v944 = vpop.xlane.xlu0 %943
      %945 = vadd.xlane.f32.xlu0 %v692
      %v946 = vpop.xlane.xlu0 %945
      %947 = vadd.xlane.f32.xlu0 %v693
      %v948 = vpop.xlane.xlu0 %947
      %949 = vadd.xlane.f32.xlu0 %v694
      %v950 = vpop.xlane.xlu0 %949
      %v951 = vadd.f32 %v696, 0.0
      %v952 = vadd.f32 %v698, 0.0
      %v953 = vadd.f32 %v700, 0.0
      %v954 = vadd.f32 %v702, 0.0
      %v955 = vadd.f32 %v704, 0.0
      %v956 = vadd.f32 %v706, 0.0
      %v957 = vadd.f32 %v708, 0.0
      %v958 = vadd.f32 %v710, 0.0
      %v959 = vadd.f32 %v712, 0.0
      %v960 = vadd.f32 %v714, 0.0
      %v961 = vadd.f32 %v716, 0.0
      %v962 = vadd.f32 %v718, 0.0
      %v963 = vadd.f32 %v720, 0.0
      %v964 = vadd.f32 %v722, 0.0
      %v965 = vadd.f32 %v724, 0.0
      %v966 = vadd.f32 %v726, 0.0
      %v967 = vadd.f32 %v728, 0.0
      %v968 = vadd.f32 %v730, 0.0
      %v969 = vadd.f32 %v732, 0.0
      %v970 = vadd.f32 %v734, 0.0
      %v971 = vadd.f32 %v736, 0.0
      %v972 = vadd.f32 %v738, 0.0
      %v973 = vadd.f32 %v740, 0.0
      %v974 = vadd.f32 %v742, 0.0
      %v975 = vadd.f32 %v744, 0.0
      %v976 = vadd.f32 %v746, 0.0
      %v977 = vadd.f32 %v748, 0.0
      %v978 = vadd.f32 %v750, 0.0
      %v979 = vadd.f32 %v752, 0.0
      %v980 = vadd.f32 %v754, 0.0
      %v981 = vadd.f32 %v756, 0.0
      %v982 = vadd.f32 %v758, 0.0
      %v983 = vadd.f32 %v760, 0.0
      %v984 = vadd.f32 %v762, 0.0
      %v985 = vadd.f32 %v764, 0.0
      %v986 = vadd.f32 %v766, 0.0
      %v987 = vadd.f32 %v768, 0.0
      %v988 = vadd.f32 %v770, 0.0
      %v989 = vadd.f32 %v772, 0.0
      %v990 = vadd.f32 %v774, 0.0
      %v991 = vadd.f32 %v776, 0.0
      %v992 = vadd.f32 %v778, 0.0
      %v993 = vadd.f32 %v780, 0.0
      %v994 = vadd.f32 %v782, 0.0
      %v995 = vadd.f32 %v784, 0.0
      %v996 = vadd.f32 %v786, 0.0
      %v997 = vadd.f32 %v788, 0.0
      %v998 = vadd.f32 %v790, 0.0
      %v999 = vadd.f32 %v792, 0.0
      %v1000 = vadd.f32 %v794, 0.0
      %v1001 = vadd.f32 %v796, 0.0
      %v1002 = vadd.f32 %v798, 0.0
      %v1003 = vadd.f32 %v800, 0.0
      %v1004 = vadd.f32 %v802, 0.0
      %v1005 = vadd.f32 %v804, 0.0
      %v1006 = vadd.f32 %v806, 0.0
      %v1007 = vadd.f32 %v808, 0.0
      %v1008 = vadd.f32 %v810, 0.0
      %v1009 = vadd.f32 %v812, 0.0
      %v1010 = vadd.f32 %v814, 0.0
      %v1011 = vadd.f32 %v816, 0.0
      %v1012 = vadd.f32 %v818, 0.0
      %v1013 = vadd.f32 %v820, 0.0
      %v1014 = vadd.f32 %v822, 0.0
      %v1015 = vadd.f32 %v824, 0.0
      %v1016 = vadd.f32 %v826, 0.0
      %v1017 = vadd.f32 %v828, 0.0
      %v1018 = vadd.f32 %v830, 0.0
      %v1019 = vadd.f32 %v832, 0.0
      %v1020 = vadd.f32 %v834, 0.0
      %v1021 = vadd.f32 %v836, 0.0
      %v1022 = vadd.f32 %v838, 0.0
      %v1023 = vadd.f32 %v840, 0.0
      %v1024 = vadd.f32 %v842, 0.0
      %v1025 = vadd.f32 %v844, 0.0
      %v1026 = vadd.f32 %v846, 0.0
      %v1027 = vadd.f32 %v848, 0.0
      %v1028 = vadd.f32 %v850, 0.0
      %v1029 = vadd.f32 %v852, 0.0
      %v1030 = vadd.f32 %v854, 0.0
      %v1031 = vadd.f32 %v856, 0.0
      %v1032 = vadd.f32 %v858, 0.0
      %v1033 = vadd.f32 %v860, 0.0
      %v1034 = vadd.f32 %v862, 0.0
      %v1035 = vadd.f32 %v864, 0.0
      %v1036 = vadd.f32 %v866, 0.0
      %v1037 = vadd.f32 %v868, 0.0
      %v1038 = vadd.f32 %v870, 0.0
      %v1039 = vadd.f32 %v872, 0.0
      %v1040 = vadd.f32 %v874, 0.0
      %v1041 = vadd.f32 %v876, 0.0
      %v1042 = vadd.f32 %v878, 0.0
      %v1043 = vadd.f32 %v880, 0.0
      %v1044 = vadd.f32 %v882, 0.0
      %v1045 = vadd.f32 %v884, 0.0
      %v1046 = vadd.f32 %v886, 0.0
      %v1047 = vadd.f32 %v888, 0.0
      %v1048 = vadd.f32 %v890, 0.0
      %v1049 = vadd.f32 %v892, 0.0
      %v1050 = vadd.f32 %v894, 0.0
      %v1051 = vadd.f32 %v896, 0.0
      %v1052 = vadd.f32 %v898, 0.0
      %v1053 = vadd.f32 %v900, 0.0
      %v1054 = vadd.f32 %v902, 0.0
      %v1055 = vadd.f32 %v904, 0.0
      %v1056 = vadd.f32 %v906, 0.0
      %v1057 = vadd.f32 %v908, 0.0
      %v1058 = vadd.f32 %v910, 0.0
      %v1059 = vadd.f32 %v912, 0.0
      %v1060 = vadd.f32 %v914, 0.0
      %v1061 = vadd.f32 %v916, 0.0
      %v1062 = vadd.f32 %v918, 0.0
      %v1063 = vadd.f32 %v920, 0.0
      %v1064 = vadd.f32 %v922, 0.0
      %v1065 = vadd.f32 %v924, 0.0
      %v1066 = vadd.f32 %v926, 0.0
      %v1067 = vadd.f32 %v928, 0.0
      %v1068 = vadd.f32 %v930, 0.0
      %v1069 = vadd.f32 %v932, 0.0
      %v1070 = vadd.f32 %v934, 0.0
      %v1071 = vadd.f32 %v936, 0.0
      %v1072 = vadd.f32 %v938, 0.0
      %v1073 = vadd.f32 %v940, 0.0
      %v1074 = vadd.f32 %v942, 0.0
      %v1075 = vadd.f32 %v944, 0.0
      %v1076 = vadd.f32 %v946, 0.0
      %v1077 = vadd.f32 %v948, 0.0
      %v1078 = vadd.f32 %v950, 0.0
      %vm1079 = vcmp.lt.s32.totalorder %v198, %v167
      %v1080 = vcvt.f32.s32.to.zero.pseudo %v951
      %v1081 = vcvt.f32.s32.to.zero.pseudo %v952
      %v1082 = vcvt.f32.s32.to.zero.pseudo %v953
      %v1083 = vcvt.f32.s32.to.zero.pseudo %v954
      %v1084 = vcvt.f32.s32.to.zero.pseudo %v955
      %v1085 = vcvt.f32.s32.to.zero.pseudo %v956
      %v1086 = vcvt.f32.s32.to.zero.pseudo %v957
      %v1087 = vcvt.f32.s32.to.zero.pseudo %v958
      %v1088 = vcvt.f32.s32.to.zero.pseudo %v959
      %v1089 = vcvt.f32.s32.to.zero.pseudo %v960
      %v1090 = vcvt.f32.s32.to.zero.pseudo %v961
      %v1091 = vcvt.f32.s32.to.zero.pseudo %v962
      %v1092 = vcvt.f32.s32.to.zero.pseudo %v963
      %v1093 = vcvt.f32.s32.to.zero.pseudo %v964
      %v1094 = vcvt.f32.s32.to.zero.pseudo %v965
      %v1095 = vcvt.f32.s32.to.zero.pseudo %v966
      %v1096 = vcvt.f32.s32.to.zero.pseudo %v967
      %v1097 = vcvt.f32.s32.to.zero.pseudo %v968
      %v1098 = vcvt.f32.s32.to.zero.pseudo %v969
      %v1099 = vcvt.f32.s32.to.zero.pseudo %v970
      %v1100 = vcvt.f32.s32.to.zero.pseudo %v971
      %v1101 = vcvt.f32.s32.to.zero.pseudo %v972
      %v1102 = vcvt.f32.s32.to.zero.pseudo %v973
      %v1103 = vcvt.f32.s32.to.zero.pseudo %v974
      %v1104 = vcvt.f32.s32.to.zero.pseudo %v975
      %v1105 = vcvt.f32.s32.to.zero.pseudo %v976
      %v1106 = vcvt.f32.s32.to.zero.pseudo %v977
      %v1107 = vcvt.f32.s32.to.zero.pseudo %v978
      %v1108 = vcvt.f32.s32.to.zero.pseudo %v979
      %v1109 = vcvt.f32.s32.to.zero.pseudo %v980
      %v1110 = vcvt.f32.s32.to.zero.pseudo %v981
      %v1111 = vcvt.f32.s32.to.zero.pseudo %v982
      %v1112 = vcvt.f32.s32.to.zero.pseudo %v983
      %v1113 = vcvt.f32.s32.to.zero.pseudo %v984
      %v1114 = vcvt.f32.s32.to.zero.pseudo %v985
      %v1115 = vcvt.f32.s32.to.zero.pseudo %v986
      %v1116 = vcvt.f32.s32.to.zero.pseudo %v987
      %v1117 = vcvt.f32.s32.to.zero.pseudo %v988
      %v1118 = vcvt.f32.s32.to.zero.pseudo %v989
      %v1119 = vcvt.f32.s32.to.zero.pseudo %v990
      %v1120 = vcvt.f32.s32.to.zero.pseudo %v991
      %v1121 = vcvt.f32.s32.to.zero.pseudo %v992
      %v1122 = vcvt.f32.s32.to.zero.pseudo %v993
      %v1123 = vcvt.f32.s32.to.zero.pseudo %v994
      %v1124 = vcvt.f32.s32.to.zero.pseudo %v995
      %v1125 = vcvt.f32.s32.to.zero.pseudo %v996
      %v1126 = vcvt.f32.s32.to.zero.pseudo %v997
      %v1127 = vcvt.f32.s32.to.zero.pseudo %v998
      %v1128 = vcvt.f32.s32.to.zero.pseudo %v999
      %v1129 = vcvt.f32.s32.to.zero.pseudo %v1000
      %v1130 = vcvt.f32.s32.to.zero.pseudo %v1001
      %v1131 = vcvt.f32.s32.to.zero.pseudo %v1002
      %v1132 = vcvt.f32.s32.to.zero.pseudo %v1003
      %v1133 = vcvt.f32.s32.to.zero.pseudo %v1004
      %v1134 = vcvt.f32.s32.to.zero.pseudo %v1005
      %v1135 = vcvt.f32.s32.to.zero.pseudo %v1006
      %v1136 = vcvt.f32.s32.to.zero.pseudo %v1007
      %v1137 = vcvt.f32.s32.to.zero.pseudo %v1008
      %v1138 = vcvt.f32.s32.to.zero.pseudo %v1009
      %v1139 = vcvt.f32.s32.to.zero.pseudo %v1010
      %v1140 = vcvt.f32.s32.to.zero.pseudo %v1011
      %v1141 = vcvt.f32.s32.to.zero.pseudo %v1012
      %v1142 = vcvt.f32.s32.to.zero.pseudo %v1013
      %v1143 = vcvt.f32.s32.to.zero.pseudo %v1014
      %v1144 = vcvt.f32.s32.to.zero.pseudo %v1015
      %v1145 = vcvt.f32.s32.to.zero.pseudo %v1016
      %v1146 = vcvt.f32.s32.to.zero.pseudo %v1017
      %v1147 = vcvt.f32.s32.to.zero.pseudo %v1018
      %v1148 = vcvt.f32.s32.to.zero.pseudo %v1019
      %v1149 = vcvt.f32.s32.to.zero.pseudo %v1020
      %v1150 = vcvt.f32.s32.to.zero.pseudo %v1021
      %v1151 = vcvt.f32.s32.to.zero.pseudo %v1022
      %v1152 = vcvt.f32.s32.to.zero.pseudo %v1023
      %v1153 = vcvt.f32.s32.to.zero.pseudo %v1024
      %v1154 = vcvt.f32.s32.to.zero.pseudo %v1025
      %v1155 = vcvt.f32.s32.to.zero.pseudo %v1026
      %v1156 = vcvt.f32.s32.to.zero.pseudo %v1027
      %v1157 = vcvt.f32.s32.to.zero.pseudo %v1028
      %v1158 = vcvt.f32.s32.to.zero.pseudo %v1029
      %v1159 = vcvt.f32.s32.to.zero.pseudo %v1030
      %v1160 = vcvt.f32.s32.to.zero.pseudo %v1031
      %v1161 = vcvt.f32.s32.to.zero.pseudo %v1032
      %v1162 = vcvt.f32.s32.to.zero.pseudo %v1033
      %v1163 = vcvt.f32.s32.to.zero.pseudo %v1034
      %v1164 = vcvt.f32.s32.to.zero.pseudo %v1035
      %v1165 = vcvt.f32.s32.to.zero.pseudo %v1036
      %v1166 = vcvt.f32.s32.to.zero.pseudo %v1037
      %v1167 = vcvt.f32.s32.to.zero.pseudo %v1038
      %v1168 = vcvt.f32.s32.to.zero.pseudo %v1039
      %v1169 = vcvt.f32.s32.to.zero.pseudo %v1040
      %v1170 = vcvt.f32.s32.to.zero.pseudo %v1041
      %v1171 = vcvt.f32.s32.to.zero.pseudo %v1042
      %v1172 = vcvt.f32.s32.to.zero.pseudo %v1043
      %v1173 = vcvt.f32.s32.to.zero.pseudo %v1044
      %v1174 = vcvt.f32.s32.to.zero.pseudo %v1045
      %v1175 = vcvt.f32.s32.to.zero.pseudo %v1046
      %v1176 = vcvt.f32.s32.to.zero.pseudo %v1047
      %v1177 = vcvt.f32.s32.to.zero.pseudo %v1048
      %v1178 = vcvt.f32.s32.to.zero.pseudo %v1049
      %v1179 = vcvt.f32.s32.to.zero.pseudo %v1050
      %v1180 = vcvt.f32.s32.to.zero.pseudo %v1051
      %v1181 = vcvt.f32.s32.to.zero.pseudo %v1052
      %v1182 = vcvt.f32.s32.to.zero.pseudo %v1053
      %v1183 = vcvt.f32.s32.to.zero.pseudo %v1054
      %v1184 = vcvt.f32.s32.to.zero.pseudo %v1055
      %v1185 = vcvt.f32.s32.to.zero.pseudo %v1056
      %v1186 = vcvt.f32.s32.to.zero.pseudo %v1057
      %v1187 = vcvt.f32.s32.to.zero.pseudo %v1058
      %v1188 = vcvt.f32.s32.to.zero.pseudo %v1059
      %v1189 = vcvt.f32.s32.to.zero.pseudo %v1060
      %v1190 = vcvt.f32.s32.to.zero.pseudo %v1061
      %v1191 = vcvt.f32.s32.to.zero.pseudo %v1062
      %v1192 = vcvt.f32.s32.to.zero.pseudo %v1063
      %v1193 = vcvt.f32.s32.to.zero.pseudo %v1064
      %v1194 = vcvt.f32.s32.to.zero.pseudo %v1065
      %v1195 = vcvt.f32.s32.to.zero.pseudo %v1066
      %v1196 = vcvt.f32.s32.to.zero.pseudo %v1067
      %v1197 = vcvt.f32.s32.to.zero.pseudo %v1068
      %v1198 = vcvt.f32.s32.to.zero.pseudo %v1069
      %v1199 = vcvt.f32.s32.to.zero.pseudo %v1070
      %v1200 = vcvt.f32.s32.to.zero.pseudo %v1071
      %v1201 = vcvt.f32.s32.to.zero.pseudo %v1072
      %v1202 = vcvt.f32.s32.to.zero.pseudo %v1073
      %v1203 = vcvt.f32.s32.to.zero.pseudo %v1074
      %v1204 = vcvt.f32.s32.to.zero.pseudo %v1075
      %v1205 = vcvt.f32.s32.to.zero.pseudo %v1076
      %v1206 = vcvt.f32.s32.to.zero.pseudo %v1077
      %v1207 = vcvt.f32.s32.to.zero.pseudo %v1078
      %v1208 = vlaneseq
      %v1209 = vshrl.u32 %v1208, 7
      %v1210 = vsub.s32 %v198, %v1209
      %v1211 = vrot.slane %v1080, %v1210
      %v1212 = vadd.s32 %v198, 4294967288
      %v1213 = vlaneseq
      %v1214 = vshrl.u32 %v1213, 7
      %v1215 = vsub.s32 %v1212, %v1214
      %v1216 = vrot.slane %v1081, %v1215
      %vm1217 = vcmask 130112
      %v1218 = vsel %vm1217, %v1216, %v1211
      %v1219 = vadd.s32 %v198, 4294967280
      %v1220 = vlaneseq
      %v1221 = vshrl.u32 %v1220, 7
      %v1222 = vsub.s32 %v1219, %v1221
      %v1223 = vrot.slane %v1082, %v1222
      %vm1224 = vcmask 195712
      %v1225 = vsel %vm1224, %v1223, %v1218
      %v1226 = vadd.s32 %v198, 4294967272
      %v1227 = vlaneseq
      %v1228 = vshrl.u32 %v1227, 7
      %v1229 = vsub.s32 %v1226, %v1228
      %v1230 = vrot.slane %v1083, %v1229
      %vm1231 = vcmask 261312
      %v1232 = vsel %vm1231, %v1230, %v1225
      %v1233 = vadd.s32 %v198, 4294967264
      %v1234 = vlaneseq
      %v1235 = vshrl.u32 %v1234, 7
      %v1236 = vsub.s32 %v1233, %v1235
      %v1237 = vrot.slane %v1084, %v1236
      %vm1238 = vcmask 326912
      %v1239 = vsel %vm1238, %v1237, %v1232
      %v1240 = vadd.s32 %v198, 4294967256
      %v1241 = vlaneseq
      %v1242 = vshrl.u32 %v1241, 7
      %v1243 = vsub.s32 %v1240, %v1242
      %v1244 = vrot.slane %v1085, %v1243
      %vm1245 = vcmask 392512
      %v1246 = vsel %vm1245, %v1244, %v1239
      %v1247 = vadd.s32 %v198, 4294967248
      %v1248 = vlaneseq
      %v1249 = vshrl.u32 %v1248, 7
      %v1250 = vsub.s32 %v1247, %v1249
      %v1251 = vrot.slane %v1086, %v1250
      %vm1252 = vcmask 458112
      %v1253 = vsel %vm1252, %v1251, %v1246
      %v1254 = vadd.s32 %v198, 4294967240
      %v1255 = vlaneseq
      %v1256 = vshrl.u32 %v1255, 7
      %v1257 = vsub.s32 %v1254, %v1256
      %v1258 = vrot.slane %v1087, %v1257
      %vm1259 = vcmask 523712
      %v1260 = vsel %vm1259, %v1258, %v1253
      %v1261 = vadd.s32 %v198, 4294967232
      %v1262 = vlaneseq
      %v1263 = vshrl.u32 %v1262, 7
      %v1264 = vsub.s32 %v1261, %v1263
      %v1265 = vrot.slane %v1088, %v1264
      %vm1266 = vcmask 589312
      %v1267 = vsel %vm1266, %v1265, %v1260
      %v1268 = vadd.s32 %v198, 4294967224
      %v1269 = vlaneseq
      %v1270 = vshrl.u32 %v1269, 7
      %v1271 = vsub.s32 %v1268, %v1270
      %v1272 = vrot.slane %v1089, %v1271
      %vm1273 = vcmask 654912
      %v1274 = vsel %vm1273, %v1272, %v1267
      %v1275 = vadd.s32 %v198, 4294967216
      %v1276 = vlaneseq
      %v1277 = vshrl.u32 %v1276, 7
      %v1278 = vsub.s32 %v1275, %v1277
      %v1279 = vrot.slane %v1090, %v1278
      %vm1280 = vcmask 720512
      %v1281 = vsel %vm1280, %v1279, %v1274
      %v1282 = vadd.s32 %v198, 4294967208
      %v1283 = vlaneseq
      %v1284 = vshrl.u32 %v1283, 7
      %v1285 = vsub.s32 %v1282, %v1284
      %v1286 = vrot.slane %v1091, %v1285
      %vm1287 = vcmask 786112
      %v1288 = vsel %vm1287, %v1286, %v1281
      %v1289 = vadd.s32 %v198, 4294967200
      %v1290 = vlaneseq
      %v1291 = vshrl.u32 %v1290, 7
      %v1292 = vsub.s32 %v1289, %v1291
      %v1293 = vrot.slane %v1092, %v1292
      %vm1294 = vcmask 851712
      %v1295 = vsel %vm1294, %v1293, %v1288
      %v1296 = vadd.s32 %v198, 4294967192
      %v1297 = vlaneseq
      %v1298 = vshrl.u32 %v1297, 7
      %v1299 = vsub.s32 %v1296, %v1298
      %v1300 = vrot.slane %v1093, %v1299
      %vm1301 = vcmask 917312
      %v1302 = vsel %vm1301, %v1300, %v1295
      %v1303 = vadd.s32 %v198, 4294967184
      %v1304 = vlaneseq
      %v1305 = vshrl.u32 %v1304, 7
      %v1306 = vsub.s32 %v1303, %v1305
      %v1307 = vrot.slane %v1094, %v1306
      %vm1308 = vcmask 982912
      %v1309 = vsel %vm1308, %v1307, %v1302
      %v1310 = vadd.s32 %v198, 4294967176
      %v1311 = vlaneseq
      %v1312 = vshrl.u32 %v1311, 7
      %v1313 = vsub.s32 %v1310, %v1312
      %v1314 = vrot.slane %v1095, %v1313
      %vm1315 = vcmask 1048512
      %v1316 = vsel %vm1315, %v1314, %v1309
      %v1317 = vlaneseq
      %v1318 = vshrl.u32 %v1317, 7
      %v1319 = vsub.s32 %v198, %v1318
      %v1320 = vrot.slane %v1096, %v1319
      %v1321 = vlaneseq
      %v1322 = vshrl.u32 %v1321, 7
      %v1323 = vsub.s32 %v1212, %v1322
      %v1324 = vrot.slane %v1097, %v1323
      %v1325 = vsel %vm1217, %v1324, %v1320
      %v1326 = vlaneseq
      %v1327 = vshrl.u32 %v1326, 7
      %v1328 = vsub.s32 %v1219, %v1327
      %v1329 = vrot.slane %v1098, %v1328
      %v1330 = vsel %vm1224, %v1329, %v1325
      %v1331 = vlaneseq
      %v1332 = vshrl.u32 %v1331, 7
      %v1333 = vsub.s32 %v1226, %v1332
      %v1334 = vrot.slane %v1099, %v1333
      %v1335 = vsel %vm1231, %v1334, %v1330
      %v1336 = vlaneseq
      %v1337 = vshrl.u32 %v1336, 7
      %v1338 = vsub.s32 %v1233, %v1337
      %v1339 = vrot.slane %v1100, %v1338
      %v1340 = vsel %vm1238, %v1339, %v1335
      %v1341 = vlaneseq
      %v1342 = vshrl.u32 %v1341, 7
      %v1343 = vsub.s32 %v1240, %v1342
      %v1344 = vrot.slane %v1101, %v1343
      %v1345 = vsel %vm1245, %v1344, %v1340
      %v1346 = vlaneseq
      %v1347 = vshrl.u32 %v1346, 7
      %v1348 = vsub.s32 %v1247, %v1347
      %v1349 = vrot.slane %v1102, %v1348
      %v1350 = vsel %vm1252, %v1349, %v1345
      %v1351 = vlaneseq
      %v1352 = vshrl.u32 %v1351, 7
      %v1353 = vsub.s32 %v1254, %v1352
      %v1354 = vrot.slane %v1103, %v1353
      %v1355 = vsel %vm1259, %v1354, %v1350
      %v1356 = vlaneseq
      %v1357 = vshrl.u32 %v1356, 7
      %v1358 = vsub.s32 %v1261, %v1357
      %v1359 = vrot.slane %v1104, %v1358
      %v1360 = vsel %vm1266, %v1359, %v1355
      %v1361 = vlaneseq
      %v1362 = vshrl.u32 %v1361, 7
      %v1363 = vsub.s32 %v1268, %v1362
      %v1364 = vrot.slane %v1105, %v1363
      %v1365 = vsel %vm1273, %v1364, %v1360
      %v1366 = vlaneseq
      %v1367 = vshrl.u32 %v1366, 7
      %v1368 = vsub.s32 %v1275, %v1367
      %v1369 = vrot.slane %v1106, %v1368
      %v1370 = vsel %vm1280, %v1369, %v1365
      %v1371 = vlaneseq
      %v1372 = vshrl.u32 %v1371, 7
      %v1373 = vsub.s32 %v1282, %v1372
      %v1374 = vrot.slane %v1107, %v1373
      %v1375 = vsel %vm1287, %v1374, %v1370
      %v1376 = vlaneseq
      %v1377 = vshrl.u32 %v1376, 7
      %v1378 = vsub.s32 %v1289, %v1377
      %v1379 = vrot.slane %v1108, %v1378
      %v1380 = vsel %vm1294, %v1379, %v1375
      %v1381 = vlaneseq
      %v1382 = vshrl.u32 %v1381, 7
      %v1383 = vsub.s32 %v1296, %v1382
      %v1384 = vrot.slane %v1109, %v1383
      %v1385 = vsel %vm1301, %v1384, %v1380
      %v1386 = vlaneseq
      %v1387 = vshrl.u32 %v1386, 7
      %v1388 = vsub.s32 %v1303, %v1387
      %v1389 = vrot.slane %v1110, %v1388
      %v1390 = vsel %vm1308, %v1389, %v1385
      %v1391 = vlaneseq
      %v1392 = vshrl.u32 %v1391, 7
      %v1393 = vsub.s32 %v1310, %v1392
      %v1394 = vrot.slane %v1111, %v1393
      %v1395 = vsel %vm1315, %v1394, %v1390
      %v1396 = vlaneseq
      %v1397 = vshrl.u32 %v1396, 7
      %v1398 = vsub.s32 %v198, %v1397
      %v1399 = vrot.slane %v1112, %v1398
      %v1400 = vlaneseq
      %v1401 = vshrl.u32 %v1400, 7
      %v1402 = vsub.s32 %v1212, %v1401
      %v1403 = vrot.slane %v1113, %v1402
      %v1404 = vsel %vm1217, %v1403, %v1399
      %v1405 = vlaneseq
      %v1406 = vshrl.u32 %v1405, 7
      %v1407 = vsub.s32 %v1219, %v1406
      %v1408 = vrot.slane %v1114, %v1407
      %v1409 = vsel %vm1224, %v1408, %v1404
      %v1410 = vlaneseq
      %v1411 = vshrl.u32 %v1410, 7
      %v1412 = vsub.s32 %v1226, %v1411
      %v1413 = vrot.slane %v1115, %v1412
      %v1414 = vsel %vm1231, %v1413, %v1409
      %v1415 = vlaneseq
      %v1416 = vshrl.u32 %v1415, 7
      %v1417 = vsub.s32 %v1233, %v1416
      %v1418 = vrot.slane %v1116, %v1417
      %v1419 = vsel %vm1238, %v1418, %v1414
      %v1420 = vlaneseq
      %v1421 = vshrl.u32 %v1420, 7
      %v1422 = vsub.s32 %v1240, %v1421
      %v1423 = vrot.slane %v1117, %v1422
      %v1424 = vsel %vm1245, %v1423, %v1419
      %v1425 = vlaneseq
      %v1426 = vshrl.u32 %v1425, 7
      %v1427 = vsub.s32 %v1247, %v1426
      %v1428 = vrot.slane %v1118, %v1427
      %v1429 = vsel %vm1252, %v1428, %v1424
      %v1430 = vlaneseq
      %v1431 = vshrl.u32 %v1430, 7
      %v1432 = vsub.s32 %v1254, %v1431
      %v1433 = vrot.slane %v1119, %v1432
      %v1434 = vsel %vm1259, %v1433, %v1429
      %v1435 = vlaneseq
      %v1436 = vshrl.u32 %v1435, 7
      %v1437 = vsub.s32 %v1261, %v1436
      %v1438 = vrot.slane %v1120, %v1437
      %v1439 = vsel %vm1266, %v1438, %v1434
      %v1440 = vlaneseq
      %v1441 = vshrl.u32 %v1440, 7
      %v1442 = vsub.s32 %v1268, %v1441
      %v1443 = vrot.slane %v1121, %v1442
      %v1444 = vsel %vm1273, %v1443, %v1439
      %v1445 = vlaneseq
      %v1446 = vshrl.u32 %v1445, 7
      %v1447 = vsub.s32 %v1275, %v1446
      %v1448 = vrot.slane %v1122, %v1447
      %v1449 = vsel %vm1280, %v1448, %v1444
      %v1450 = vlaneseq
      %v1451 = vshrl.u32 %v1450, 7
      %v1452 = vsub.s32 %v1282, %v1451
      %v1453 = vrot.slane %v1123, %v1452
      %v1454 = vsel %vm1287, %v1453, %v1449
      %v1455 = vlaneseq
      %v1456 = vshrl.u32 %v1455, 7
      %v1457 = vsub.s32 %v1289, %v1456
      %v1458 = vrot.slane %v1124, %v1457
      %v1459 = vsel %vm1294, %v1458, %v1454
      %v1460 = vlaneseq
      %v1461 = vshrl.u32 %v1460, 7
      %v1462 = vsub.s32 %v1296, %v1461
      %v1463 = vrot.slane %v1125, %v1462
      %v1464 = vsel %vm1301, %v1463, %v1459
      %v1465 = vlaneseq
      %v1466 = vshrl.u32 %v1465, 7
      %v1467 = vsub.s32 %v1303, %v1466
      %v1468 = vrot.slane %v1126, %v1467
      %v1469 = vsel %vm1308, %v1468, %v1464
      %v1470 = vlaneseq
      %v1471 = vshrl.u32 %v1470, 7
      %v1472 = vsub.s32 %v1310, %v1471
      %v1473 = vrot.slane %v1127, %v1472
      %v1474 = vsel %vm1315, %v1473, %v1469
      %v1475 = vlaneseq
      %v1476 = vshrl.u32 %v1475, 7
      %v1477 = vsub.s32 %v198, %v1476
      %v1478 = vrot.slane %v1128, %v1477
      %v1479 = vlaneseq
      %v1480 = vshrl.u32 %v1479, 7
      %v1481 = vsub.s32 %v1212, %v1480
      %v1482 = vrot.slane %v1129, %v1481
      %v1483 = vsel %vm1217, %v1482, %v1478
      %v1484 = vlaneseq
      %v1485 = vshrl.u32 %v1484, 7
      %v1486 = vsub.s32 %v1219, %v1485
      %v1487 = vrot.slane %v1130, %v1486
      %v1488 = vsel %vm1224, %v1487, %v1483
      %v1489 = vlaneseq
      %v1490 = vshrl.u32 %v1489, 7
      %v1491 = vsub.s32 %v1226, %v1490
      %v1492 = vrot.slane %v1131, %v1491
      %v1493 = vsel %vm1231, %v1492, %v1488
      %v1494 = vlaneseq
      %v1495 = vshrl.u32 %v1494, 7
      %v1496 = vsub.s32 %v1233, %v1495
      %v1497 = vrot.slane %v1132, %v1496
      %v1498 = vsel %vm1238, %v1497, %v1493
      %v1499 = vlaneseq
      %v1500 = vshrl.u32 %v1499, 7
      %v1501 = vsub.s32 %v1240, %v1500
      %v1502 = vrot.slane %v1133, %v1501
      %v1503 = vsel %vm1245, %v1502, %v1498
      %v1504 = vlaneseq
      %v1505 = vshrl.u32 %v1504, 7
      %v1506 = vsub.s32 %v1247, %v1505
      %v1507 = vrot.slane %v1134, %v1506
      %v1508 = vsel %vm1252, %v1507, %v1503
      %v1509 = vlaneseq
      %v1510 = vshrl.u32 %v1509, 7
      %v1511 = vsub.s32 %v1254, %v1510
      %v1512 = vrot.slane %v1135, %v1511
      %v1513 = vsel %vm1259, %v1512, %v1508
      %v1514 = vlaneseq
      %v1515 = vshrl.u32 %v1514, 7
      %v1516 = vsub.s32 %v1261, %v1515
      %v1517 = vrot.slane %v1136, %v1516
      %v1518 = vsel %vm1266, %v1517, %v1513
      %v1519 = vlaneseq
      %v1520 = vshrl.u32 %v1519, 7
      %v1521 = vsub.s32 %v1268, %v1520
      %v1522 = vrot.slane %v1137, %v1521
      %v1523 = vsel %vm1273, %v1522, %v1518
      %v1524 = vlaneseq
      %v1525 = vshrl.u32 %v1524, 7
      %v1526 = vsub.s32 %v1275, %v1525
      %v1527 = vrot.slane %v1138, %v1526
      %v1528 = vsel %vm1280, %v1527, %v1523
      %v1529 = vlaneseq
      %v1530 = vshrl.u32 %v1529, 7
      %v1531 = vsub.s32 %v1282, %v1530
      %v1532 = vrot.slane %v1139, %v1531
      %v1533 = vsel %vm1287, %v1532, %v1528
      %v1534 = vlaneseq
      %v1535 = vshrl.u32 %v1534, 7
      %v1536 = vsub.s32 %v1289, %v1535
      %v1537 = vrot.slane %v1140, %v1536
      %v1538 = vsel %vm1294, %v1537, %v1533
      %v1539 = vlaneseq
      %v1540 = vshrl.u32 %v1539, 7
      %v1541 = vsub.s32 %v1296, %v1540
      %v1542 = vrot.slane %v1141, %v1541
      %v1543 = vsel %vm1301, %v1542, %v1538
      %v1544 = vlaneseq
      %v1545 = vshrl.u32 %v1544, 7
      %v1546 = vsub.s32 %v1303, %v1545
      %v1547 = vrot.slane %v1142, %v1546
      %v1548 = vsel %vm1308, %v1547, %v1543
      %v1549 = vlaneseq
      %v1550 = vshrl.u32 %v1549, 7
      %v1551 = vsub.s32 %v1310, %v1550
      %v1552 = vrot.slane %v1143, %v1551
      %v1553 = vsel %vm1315, %v1552, %v1548
      %v1554 = vlaneseq
      %v1555 = vshrl.u32 %v1554, 7
      %v1556 = vsub.s32 %v198, %v1555
      %v1557 = vrot.slane %v1144, %v1556
      %v1558 = vlaneseq
      %v1559 = vshrl.u32 %v1558, 7
      %v1560 = vsub.s32 %v1212, %v1559
      %v1561 = vrot.slane %v1145, %v1560
      %v1562 = vsel %vm1217, %v1561, %v1557
      %v1563 = vlaneseq
      %v1564 = vshrl.u32 %v1563, 7
      %v1565 = vsub.s32 %v1219, %v1564
      %v1566 = vrot.slane %v1146, %v1565
      %v1567 = vsel %vm1224, %v1566, %v1562
      %v1568 = vlaneseq
      %v1569 = vshrl.u32 %v1568, 7
      %v1570 = vsub.s32 %v1226, %v1569
      %v1571 = vrot.slane %v1147, %v1570
      %v1572 = vsel %vm1231, %v1571, %v1567
      %v1573 = vlaneseq
      %v1574 = vshrl.u32 %v1573, 7
      %v1575 = vsub.s32 %v1233, %v1574
      %v1576 = vrot.slane %v1148, %v1575
      %v1577 = vsel %vm1238, %v1576, %v1572
      %v1578 = vlaneseq
      %v1579 = vshrl.u32 %v1578, 7
      %v1580 = vsub.s32 %v1240, %v1579
      %v1581 = vrot.slane %v1149, %v1580
      %v1582 = vsel %vm1245, %v1581, %v1577
      %v1583 = vlaneseq
      %v1584 = vshrl.u32 %v1583, 7
      %v1585 = vsub.s32 %v1247, %v1584
      %v1586 = vrot.slane %v1150, %v1585
      %v1587 = vsel %vm1252, %v1586, %v1582
      %v1588 = vlaneseq
      %v1589 = vshrl.u32 %v1588, 7
      %v1590 = vsub.s32 %v1254, %v1589
      %v1591 = vrot.slane %v1151, %v1590
      %v1592 = vsel %vm1259, %v1591, %v1587
      %v1593 = vlaneseq
      %v1594 = vshrl.u32 %v1593, 7
      %v1595 = vsub.s32 %v1261, %v1594
      %v1596 = vrot.slane %v1152, %v1595
      %v1597 = vsel %vm1266, %v1596, %v1592
      %v1598 = vlaneseq
      %v1599 = vshrl.u32 %v1598, 7
      %v1600 = vsub.s32 %v1268, %v1599
      %v1601 = vrot.slane %v1153, %v1600
      %v1602 = vsel %vm1273, %v1601, %v1597
      %v1603 = vlaneseq
      %v1604 = vshrl.u32 %v1603, 7
      %v1605 = vsub.s32 %v1275, %v1604
      %v1606 = vrot.slane %v1154, %v1605
      %v1607 = vsel %vm1280, %v1606, %v1602
      %v1608 = vlaneseq
      %v1609 = vshrl.u32 %v1608, 7
      %v1610 = vsub.s32 %v1282, %v1609
      %v1611 = vrot.slane %v1155, %v1610
      %v1612 = vsel %vm1287, %v1611, %v1607
      %v1613 = vlaneseq
      %v1614 = vshrl.u32 %v1613, 7
      %v1615 = vsub.s32 %v1289, %v1614
      %v1616 = vrot.slane %v1156, %v1615
      %v1617 = vsel %vm1294, %v1616, %v1612
      %v1618 = vlaneseq
      %v1619 = vshrl.u32 %v1618, 7
      %v1620 = vsub.s32 %v1296, %v1619
      %v1621 = vrot.slane %v1157, %v1620
      %v1622 = vsel %vm1301, %v1621, %v1617
      %v1623 = vlaneseq
      %v1624 = vshrl.u32 %v1623, 7
      %v1625 = vsub.s32 %v1303, %v1624
      %v1626 = vrot.slane %v1158, %v1625
      %v1627 = vsel %vm1308, %v1626, %v1622
      %v1628 = vlaneseq
      %v1629 = vshrl.u32 %v1628, 7
      %v1630 = vsub.s32 %v1310, %v1629
      %v1631 = vrot.slane %v1159, %v1630
      %v1632 = vsel %vm1315, %v1631, %v1627
      %v1633 = vlaneseq
      %v1634 = vshrl.u32 %v1633, 7
      %v1635 = vsub.s32 %v198, %v1634
      %v1636 = vrot.slane %v1160, %v1635
      %v1637 = vlaneseq
      %v1638 = vshrl.u32 %v1637, 7
      %v1639 = vsub.s32 %v1212, %v1638
      %v1640 = vrot.slane %v1161, %v1639
      %v1641 = vsel %vm1217, %v1640, %v1636
      %v1642 = vlaneseq
      %v1643 = vshrl.u32 %v1642, 7
      %v1644 = vsub.s32 %v1219, %v1643
      %v1645 = vrot.slane %v1162, %v1644
      %v1646 = vsel %vm1224, %v1645, %v1641
      %v1647 = vlaneseq
      %v1648 = vshrl.u32 %v1647, 7
      %v1649 = vsub.s32 %v1226, %v1648
      %v1650 = vrot.slane %v1163, %v1649
      %v1651 = vsel %vm1231, %v1650, %v1646
      %v1652 = vlaneseq
      %v1653 = vshrl.u32 %v1652, 7
      %v1654 = vsub.s32 %v1233, %v1653
      %v1655 = vrot.slane %v1164, %v1654
      %v1656 = vsel %vm1238, %v1655, %v1651
      %v1657 = vlaneseq
      %v1658 = vshrl.u32 %v1657, 7
      %v1659 = vsub.s32 %v1240, %v1658
      %v1660 = vrot.slane %v1165, %v1659
      %v1661 = vsel %vm1245, %v1660, %v1656
      %v1662 = vlaneseq
      %v1663 = vshrl.u32 %v1662, 7
      %v1664 = vsub.s32 %v1247, %v1663
      %v1665 = vrot.slane %v1166, %v1664
      %v1666 = vsel %vm1252, %v1665, %v1661
      %v1667 = vlaneseq
      %v1668 = vshrl.u32 %v1667, 7
      %v1669 = vsub.s32 %v1254, %v1668
      %v1670 = vrot.slane %v1167, %v1669
      %v1671 = vsel %vm1259, %v1670, %v1666
      %v1672 = vlaneseq
      %v1673 = vshrl.u32 %v1672, 7
      %v1674 = vsub.s32 %v1261, %v1673
      %v1675 = vrot.slane %v1168, %v1674
      %v1676 = vsel %vm1266, %v1675, %v1671
      %v1677 = vlaneseq
      %v1678 = vshrl.u32 %v1677, 7
      %v1679 = vsub.s32 %v1268, %v1678
      %v1680 = vrot.slane %v1169, %v1679
      %v1681 = vsel %vm1273, %v1680, %v1676
      %v1682 = vlaneseq
      %v1683 = vshrl.u32 %v1682, 7
      %v1684 = vsub.s32 %v1275, %v1683
      %v1685 = vrot.slane %v1170, %v1684
      %v1686 = vsel %vm1280, %v1685, %v1681
      %v1687 = vlaneseq
      %v1688 = vshrl.u32 %v1687, 7
      %v1689 = vsub.s32 %v1282, %v1688
      %v1690 = vrot.slane %v1171, %v1689
      %v1691 = vsel %vm1287, %v1690, %v1686
      %v1692 = vlaneseq
      %v1693 = vshrl.u32 %v1692, 7
      %v1694 = vsub.s32 %v1289, %v1693
      %v1695 = vrot.slane %v1172, %v1694
      %v1696 = vsel %vm1294, %v1695, %v1691
      %v1697 = vlaneseq
      %v1698 = vshrl.u32 %v1697, 7
      %v1699 = vsub.s32 %v1296, %v1698
      %v1700 = vrot.slane %v1173, %v1699
      %v1701 = vsel %vm1301, %v1700, %v1696
      %v1702 = vlaneseq
      %v1703 = vshrl.u32 %v1702, 7
      %v1704 = vsub.s32 %v1303, %v1703
      %v1705 = vrot.slane %v1174, %v1704
      %v1706 = vsel %vm1308, %v1705, %v1701
      %v1707 = vlaneseq
      %v1708 = vshrl.u32 %v1707, 7
      %v1709 = vsub.s32 %v1310, %v1708
      %v1710 = vrot.slane %v1175, %v1709
      %v1711 = vsel %vm1315, %v1710, %v1706
      %v1712 = vlaneseq
      %v1713 = vshrl.u32 %v1712, 7
      %v1714 = vsub.s32 %v198, %v1713
      %v1715 = vrot.slane %v1176, %v1714
      %v1716 = vlaneseq
      %v1717 = vshrl.u32 %v1716, 7
      %v1718 = vsub.s32 %v1212, %v1717
      %v1719 = vrot.slane %v1177, %v1718
      %v1720 = vsel %vm1217, %v1719, %v1715
      %v1721 = vlaneseq
      %v1722 = vshrl.u32 %v1721, 7
      %v1723 = vsub.s32 %v1219, %v1722
      %v1724 = vrot.slane %v1178, %v1723
      %v1725 = vsel %vm1224, %v1724, %v1720
      %v1726 = vlaneseq
      %v1727 = vshrl.u32 %v1726, 7
      %v1728 = vsub.s32 %v1226, %v1727
      %v1729 = vrot.slane %v1179, %v1728
      %v1730 = vsel %vm1231, %v1729, %v1725
      %v1731 = vlaneseq
      %v1732 = vshrl.u32 %v1731, 7
      %v1733 = vsub.s32 %v1233, %v1732
      %v1734 = vrot.slane %v1180, %v1733
      %v1735 = vsel %vm1238, %v1734, %v1730
      %v1736 = vlaneseq
      %v1737 = vshrl.u32 %v1736, 7
      %v1738 = vsub.s32 %v1240, %v1737
      %v1739 = vrot.slane %v1181, %v1738
      %v1740 = vsel %vm1245, %v1739, %v1735
      %v1741 = vlaneseq
      %v1742 = vshrl.u32 %v1741, 7
      %v1743 = vsub.s32 %v1247, %v1742
      %v1744 = vrot.slane %v1182, %v1743
      %v1745 = vsel %vm1252, %v1744, %v1740
      %v1746 = vlaneseq
      %v1747 = vshrl.u32 %v1746, 7
      %v1748 = vsub.s32 %v1254, %v1747
      %v1749 = vrot.slane %v1183, %v1748
      %v1750 = vsel %vm1259, %v1749, %v1745
      %v1751 = vlaneseq
      %v1752 = vshrl.u32 %v1751, 7
      %v1753 = vsub.s32 %v1261, %v1752
      %v1754 = vrot.slane %v1184, %v1753
      %v1755 = vsel %vm1266, %v1754, %v1750
      %v1756 = vlaneseq
      %v1757 = vshrl.u32 %v1756, 7
      %v1758 = vsub.s32 %v1268, %v1757
      %v1759 = vrot.slane %v1185, %v1758
      %v1760 = vsel %vm1273, %v1759, %v1755
      %v1761 = vlaneseq
      %v1762 = vshrl.u32 %v1761, 7
      %v1763 = vsub.s32 %v1275, %v1762
      %v1764 = vrot.slane %v1186, %v1763
      %v1765 = vsel %vm1280, %v1764, %v1760
      %v1766 = vlaneseq
      %v1767 = vshrl.u32 %v1766, 7
      %v1768 = vsub.s32 %v1282, %v1767
      %v1769 = vrot.slane %v1187, %v1768
      %v1770 = vsel %vm1287, %v1769, %v1765
      %v1771 = vlaneseq
      %v1772 = vshrl.u32 %v1771, 7
      %v1773 = vsub.s32 %v1289, %v1772
      %v1774 = vrot.slane %v1188, %v1773
      %v1775 = vsel %vm1294, %v1774, %v1770
      %v1776 = vlaneseq
      %v1777 = vshrl.u32 %v1776, 7
      %v1778 = vsub.s32 %v1296, %v1777
      %v1779 = vrot.slane %v1189, %v1778
      %v1780 = vsel %vm1301, %v1779, %v1775
      %v1781 = vlaneseq
      %v1782 = vshrl.u32 %v1781, 7
      %v1783 = vsub.s32 %v1303, %v1782
      %v1784 = vrot.slane %v1190, %v1783
      %v1785 = vsel %vm1308, %v1784, %v1780
      %v1786 = vlaneseq
      %v1787 = vshrl.u32 %v1786, 7
      %v1788 = vsub.s32 %v1310, %v1787
      %v1789 = vrot.slane %v1191, %v1788
      %v1790 = vsel %vm1315, %v1789, %v1785
      %v1791 = vlaneseq
      %v1792 = vshrl.u32 %v1791, 7
      %v1793 = vsub.s32 %v198, %v1792
      %v1794 = vrot.slane %v1192, %v1793
      %v1795 = vlaneseq
      %v1796 = vshrl.u32 %v1795, 7
      %v1797 = vsub.s32 %v1212, %v1796
      %v1798 = vrot.slane %v1193, %v1797
      %v1799 = vsel %vm1217, %v1798, %v1794
      %v1800 = vlaneseq
      %v1801 = vshrl.u32 %v1800, 7
      %v1802 = vsub.s32 %v1219, %v1801
      %v1803 = vrot.slane %v1194, %v1802
      %v1804 = vsel %vm1224, %v1803, %v1799
      %v1805 = vlaneseq
      %v1806 = vshrl.u32 %v1805, 7
      %v1807 = vsub.s32 %v1226, %v1806
      %v1808 = vrot.slane %v1195, %v1807
      %v1809 = vsel %vm1231, %v1808, %v1804
      %v1810 = vlaneseq
      %v1811 = vshrl.u32 %v1810, 7
      %v1812 = vsub.s32 %v1233, %v1811
      %v1813 = vrot.slane %v1196, %v1812
      %v1814 = vsel %vm1238, %v1813, %v1809
      %v1815 = vlaneseq
      %v1816 = vshrl.u32 %v1815, 7
      %v1817 = vsub.s32 %v1240, %v1816
      %v1818 = vrot.slane %v1197, %v1817
      %v1819 = vsel %vm1245, %v1818, %v1814
      %v1820 = vlaneseq
      %v1821 = vshrl.u32 %v1820, 7
      %v1822 = vsub.s32 %v1247, %v1821
      %v1823 = vrot.slane %v1198, %v1822
      %v1824 = vsel %vm1252, %v1823, %v1819
      %v1825 = vlaneseq
      %v1826 = vshrl.u32 %v1825, 7
      %v1827 = vsub.s32 %v1254, %v1826
      %v1828 = vrot.slane %v1199, %v1827
      %v1829 = vsel %vm1259, %v1828, %v1824
      %v1830 = vlaneseq
      %v1831 = vshrl.u32 %v1830, 7
      %v1832 = vsub.s32 %v1261, %v1831
      %v1833 = vrot.slane %v1200, %v1832
      %v1834 = vsel %vm1266, %v1833, %v1829
      %v1835 = vlaneseq
      %v1836 = vshrl.u32 %v1835, 7
      %v1837 = vsub.s32 %v1268, %v1836
      %v1838 = vrot.slane %v1201, %v1837
      %v1839 = vsel %vm1273, %v1838, %v1834
      %v1840 = vlaneseq
      %v1841 = vshrl.u32 %v1840, 7
      %v1842 = vsub.s32 %v1275, %v1841
      %v1843 = vrot.slane %v1202, %v1842
      %v1844 = vsel %vm1280, %v1843, %v1839
      %v1845 = vlaneseq
      %v1846 = vshrl.u32 %v1845, 7
      %v1847 = vsub.s32 %v1282, %v1846
      %v1848 = vrot.slane %v1203, %v1847
      %v1849 = vsel %vm1287, %v1848, %v1844
      %v1850 = vlaneseq
      %v1851 = vshrl.u32 %v1850, 7
      %v1852 = vsub.s32 %v1289, %v1851
      %v1853 = vrot.slane %v1204, %v1852
      %v1854 = vsel %vm1294, %v1853, %v1849
      %v1855 = vlaneseq
      %v1856 = vshrl.u32 %v1855, 7
      %v1857 = vsub.s32 %v1296, %v1856
      %v1858 = vrot.slane %v1205, %v1857
      %v1859 = vsel %vm1301, %v1858, %v1854
      %v1860 = vlaneseq
      %v1861 = vshrl.u32 %v1860, 7
      %v1862 = vsub.s32 %v1303, %v1861
      %v1863 = vrot.slane %v1206, %v1862
      %v1864 = vsel %vm1308, %v1863, %v1859
      %v1865 = vlaneseq
      %v1866 = vshrl.u32 %v1865, 7
      %v1867 = vsub.s32 %v1310, %v1866
      %v1868 = vrot.slane %v1207, %v1867
      %v1869 = vsel %vm1315, %v1868, %v1864
      %vm1870 = vcmask 1041409
      %v1871 = vsel %vm1870, %v1395, %v1316
      %vm1872 = vcmask 1042434
      %v1873 = vsel %vm1872, %v1474, %v1871
      %vm1874 = vcmask 1043459
      %v1875 = vsel %vm1874, %v1553, %v1873
      %vm1876 = vcmask 1044484
      %v1877 = vsel %vm1876, %v1632, %v1875
      %vm1878 = vcmask 1045509
      %v1879 = vsel %vm1878, %v1711, %v1877
      %vm1880 = vcmask 1046534
      %v1881 = vsel %vm1880, %v1790, %v1879
      %vm1882 = vcmask 1047559
      %v1883 = vsel %vm1882, %v1869, %v1881
      %v1884 = vsel %vm1079, %v1883, 4294967295
      %1885 = vst [vmem:[#allocation7] sm:$0xff] %v1884
    $region17: #{tpu_custom_call.1} parent=1 // pred_fallthru
      _
    // Predicated region
    $region18: #{tpu_custom_call.1} parent=1 // pred_check
      _
    $region19: #{tpu_custom_call.1} parent=1 // pred_check_branch
      %1887 = sbr.rel (0) target = $region21
    $region20: #{tpu_custom_call.1} parent=1 // pred_region
      %s1889 = ssub.s32 128, 128
      %1890 = vsyncadd [#allocation6], %s1889
      %s1892 = sshll.u32 [#allocation7], 4
      %s1893 = int_to_ptr.vmem [resolvable:$true] %s1892
      %1895 = dma.vmem_to_hbm [thread:$0]  %s1893, 128, %s1, [#allocation6]
    $region21: #{tpu_custom_call.1} parent=1 // pred_fallthru
      _
    // Predicated region
    $region22: #{tpu_custom_call.1} parent=1 // pred_check
      _
    $region23: #{tpu_custom_call.1} parent=1 // pred_check_branch
      %1897 = sbr.rel (0) target = $region25
    $region24: #{tpu_custom_call.1} parent=1 // pred_region
      _
    $region25: #{tpu_custom_call.1} parent=1 // pred_fallthru
      _
    // Predicated region
    $region26: #{tpu_custom_call.1} parent=1 // pred_check
      _
    $region27: #{tpu_custom_call.1} parent=1 // pred_check_branch
      %1899 = sbr.rel (0) target = $region29
    $region28: #{tpu_custom_call.1} parent=1 // pred_region
      %1900 = dma.done [#allocation6], 128
    $region29: #{tpu_custom_call.1} parent=1 // pred_fallthru
      _
    // Predicated region
    $region30: #{tpu_custom_call.1} parent=1 // pred_check
      _
    $region31: #{tpu_custom_call.1} parent=1 // pred_check_branch
      %1902 = sbr.rel (0) target = $region33
    $region32: #{tpu_custom_call.1} parent=1 // pred_region
      _
    $region33: #{tpu_custom_call.1} parent=1 // pred_fallthru
      _
    %1903 = vsyncpa [#allocation5], 1
    %1904 = vsyncpa [#allocation6], 1

</llo_original>
